<compile_context>
chip_gen: v5e
topology: v5e:2x2
jax: 0.10.0
libtpu: 0.0.40
codegen_flags: <defaults>
</compile_context>

<pallas_src>
import functools

import numpy as np
import jax
import jax.numpy as jnp
from jax.experimental import pallas as pl
from jax.experimental.pallas import tpu as pltpu


# ---------------------------------------------------------------------------
# Constant 1-D operator matrices (numpy, built at trace time).
# ---------------------------------------------------------------------------

def bilinear_matrix(out_size, in_size):
    """out = U @ in, matching torch F.interpolate(mode='bilinear',
    align_corners=False) along one axis (half-pixel centers, clamped)."""
    scale = in_size / out_size
    i = np.arange(out_size, dtype=np.float64)
    src = (i + 0.5) * scale - 0.5
    src = np.maximum(src, 0.0)
    i0 = np.minimum(np.floor(src).astype(np.int64), in_size - 1)
    i1 = np.minimum(i0 + 1, in_size - 1)
    lam = src - i0
    U = np.zeros((out_size, in_size), dtype=np.float32)
    U[np.arange(out_size), i0] += (1.0 - lam).astype(np.float32)
    U[np.arange(out_size), i1] += lam.astype(np.float32)
    return U


def adaptive_avg_matrix(out_size, in_size):
    """out = P @ in, matching torch nn.AdaptiveAvgPool along one axis."""
    P = np.zeros((out_size, in_size), dtype=np.float32)
    for i in range(out_size):
        s = (i * in_size) // out_size
        e = -((-(i + 1) * in_size) // out_size)      # ceil((i+1)*in/out)
        P[i, s:e] = 1.0 / (e - s)
    return P


def reflect_pad_matrix(n, p):
    """(n+2p, n): y = R @ x is x reflection-padded by p (edge excluded)."""
    R = np.zeros((n + 2 * p, n), dtype=np.float32)
    for i in range(n + 2 * p):
        s = i - p
        if s < 0:
            s = -s
        elif s >= n:
            s = 2 * (n - 1) - s
        R[i, s] = 1.0
    return R


def crop_matrix(n, p):
    """(n, n+2p): selects the interior of a padded axis."""
    C = np.zeros((n, n + 2 * p), dtype=np.float32)
    C[np.arange(n), np.arange(n) + p] = 1.0
    return C


# ---------------------------------------------------------------------------
# Flat-layout geometry and fused (pool/upsample x reflection-pad) operators.
#
# Flat layout per branch: each image is reflection-padded to (Hp, Wp),
# flattened row-major, and `nb` images are concatenated along the lane axis.
# Valid conv-output positions live at lane  n*Hp*Wp + h*Wp + w  (h<H, w<W);
# the remaining lanes are harmless junk that the wrapper discards.
# ---------------------------------------------------------------------------

def _geom(H, W, rp, nb):
    Hp, Wp = H + 2 * rp, W + 2 * rp
    hpwp = Hp * Wp
    lt = (nb - 1) * hpwp + (H - 1) * Wp + W     # span covering all valid lanes
    return Hp, Wp, hpwp, lt


def pool_pad_flat_T(Hi, Wi, Ho, Wo, rp, nb):
    """Transposed flat operator (nb*HpWp_in, nb*HpWp_out), applied as x @ T:
    crop interior -> AdaptiveAvgPool2d -> ReflectionPad2d, per packed image."""
    PhP = reflect_pad_matrix(Ho, rp) @ adaptive_avg_matrix(Ho, Hi) @ crop_matrix(Hi, rp)
    PwP = reflect_pad_matrix(Wo, rp) @ adaptive_avg_matrix(Wo, Wi) @ crop_matrix(Wi, rp)
    G = np.kron(np.eye(nb, dtype=np.float32), np.kron(PhP, PwP))
    return np.ascontiguousarray(G.T.astype(np.float32))


def upsample_flat_T(Hi, Wi, Ho, Wo, rp, nb):
    """Transposed flat bilinear-upsample operator (Lt_in, Lt_out), x @ T.
    Junk input lanes have zero columns; junk output lanes have zero rows."""
    Hp_i, Wp_i, _, lt_i = _geom(Hi, Wi, rp, nb)
    Hp_o, Wp_o, _, lt_o = _geom(Ho, Wo, rp, nb)
    Uh = np.zeros((Hp_o, Hp_i), dtype=np.float32)
    Uh[:Ho, :Hi] = bilinear_matrix(Ho, Hi)
    Uw = np.zeros((Wp_o, Wp_i), dtype=np.float32)
    Uw[:Wo, :Wi] = bilinear_matrix(Wo, Wi)
    U = np.kron(np.eye(nb, dtype=np.float32), np.kron(Uh, Uw))
    return np.ascontiguousarray(U[:lt_o, :lt_i].T.astype(np.float32))


# ---------------------------------------------------------------------------
# Pallas kernel.
# ---------------------------------------------------------------------------

def _make_kernel(KH, KW, OP, Wpa, Wpb, Wpc, Lta, Ltb, Ltc):
    def kernel(a_ref, b_ref, c_ref, wa_ref, wb_ref, wc_ref, wab_ref, wbc_ref,
               gabT_ref, gbcT_ref, ubaT_ref, ucbT_ref,
               oa_ref, ob_ref, oc_ref):
        dot = lambda u, v: jnp.dot(u, v, preferred_element_type=jnp.float32)

        a = a_ref[0]          # (CP, nb*HpWp_a)  reflect-padded, lane-packed
        b = b_ref[0]          # (CP, nb*HpWp_b)
        c = c_ref[0]          # (CP, nb*HpWp_c)

        def patches(x, Wp, Lt):
            # im2col in the flat layout: row block k=(kh,kw) is the input
            # shifted by kh*Wp + kw.  Built ONCE per conv input and reused by
            # every output channel / every conv consuming it.
            return jnp.concatenate(
                [x[:, kh * Wp + kw: kh * Wp + kw + Lt]
                 for kh in range(KH) for kw in range(KW)], axis=0)

        # AdaptiveAvgPool2d + ReflectionPad2d fused into one matmul each.
        a_pool = dot(a, gabT_ref[...])        # (CP, nb*HpWp_b)
        b_pool = dot(b, gbcT_ref[...])        # (CP, nb*HpWp_c)

        # One im2col matmul per conv input (b2b/b2a and c2c/c2b fused by
        # stacking their output channels).
        a2a = dot(wa_ref[...],  patches(a,      Wpa, Lta))    # (OP,   Lta)
        bb  = dot(wb_ref[...],  patches(b,      Wpb, Ltb))    # (2*OP, Ltb)
        cc  = dot(wc_ref[...],  patches(c,      Wpc, Ltc))    # (2*OP, Ltc)
        a2b = dot(wab_ref[...], patches(a_pool, Wpb, Ltb))    # (OP,   Ltb)
        b2c = dot(wbc_ref[...], patches(b_pool, Wpc, Ltc))    # (OP,   Ltc)

        b2b, b2a = bb[:OP], bb[OP:]
        c2c, c2b = cc[:OP], cc[OP:]

        # Bilinear upsampling as one matmul per branch, batched over channels.
        b2a_up = dot(b2a, ubaT_ref[...])      # (OP, Lta)
        c2b_up = dot(c2b, ucbT_ref[...])      # (OP, Ltb)

        # Fused adds + ReLU, lane-dense stores.
        oa_ref[0] = jnp.maximum(a2a + b2a_up, 0.0).astype(oa_ref.dtype)
        ob_ref[0] = jnp.maximum(b2b + a2b + c2b_up, 0.0).astype(ob_ref.dtype)
        oc_ref[0] = jnp.maximum(c2c + b2c, 0.0).astype(oc_ref.dtype)

    return kernel


# ---------------------------------------------------------------------------
# Wrapper (layout plumbing only: pad/flatten/pack, then un-flatten).
# ---------------------------------------------------------------------------

def _pack_activation(x, rp, cp, nb):
    N, C, H, W = x.shape
    Hp, Wp = H + 2 * rp, W + 2 * rp
    xp = jnp.pad(x, ((0, 0), (0, 0), (rp, rp), (rp, rp)), mode='reflect')
    xp = jnp.pad(xp, ((0, 0), (0, cp - C), (0, 0), (0, 0)))
    xf = xp.reshape(N // nb, nb, cp, Hp * Wp)
    return jnp.transpose(xf, (0, 2, 1, 3)).reshape(N // nb, cp, nb * Hp * Wp)


def _unpack_output(of, H, W, rp, nb, cout):
    nblk = of.shape[0]
    Hp, Wp = H + 2 * rp, W + 2 * rp
    hpwp = Hp * Wp
    of = jnp.pad(of[:, :cout, :], ((0, 0), (0, 0), (0, Wp - W)))
    imgs = [of[:, :, n * hpwp: n * hpwp + H * Wp].reshape(nblk, cout, H, Wp)[..., :W]
            for n in range(nb)]
    return jnp.stack(imgs, axis=1).reshape(nblk * nb, cout, H, W)


def _pack_weight(w, op, cp):
    Cout, Cin, KH, KW = w.shape
    wt = jnp.transpose(w, (0, 2, 3, 1))                       # (Cout, KH, KW, Cin)
    wt = jnp.pad(wt, ((0, op - Cout), (0, 0), (0, 0), (0, cp - Cin)))
    return wt.reshape(op, KH * KW * cp)


@functools.partial(jax.jit, static_argnames=("images_per_block",))
def octave_cr_forward(a, b, c, weights, images_per_block=2):
    """OctaveCR.forward: OctaveConv (stride=1, padding=0, dilation=1, groups=1,
    bias=False) followed by ReLU on each of the three branches."""
    N, Ca, Ha, Wa = a.shape
    _, Cl, Hb, Wb = b.shape
    _, _,  Hc, Wc = c.shape
    Oa, _, KH, KW = weights['a2a'].shape
    Ol = weights['b2b'].shape[0]
    assert KH == KW and KH % 2 == 1
    rp = KH // 2                                   # ReflectionPad2d(floor(k/2))
    nb = images_per_block
    assert N % nb == 0, "batch must be divisible by images_per_block"
    nblk = N // nb

    CP = ((max(Ca, Cl) + 7) // 8) * 8              # sublane-aligned channels
    OP = ((max(Oa, Ol) + 7) // 8) * 8

    _, Wpa, hwa, Lta = _geom(Ha, Wa, rp, nb)
    _, Wpb, hwb, Ltb = _geom(Hb, Wb, rp, nb)
    _, Wpc, hwc, Ltc = _geom(Hc, Wc, rp, nb)

    af = _pack_activation(a, rp, CP, nb)
    bf = _pack_activation(b, rp, CP, nb)
    cf = _pack_activation(c, rp, CP, nb)

    wa  = _pack_weight(weights['a2a'], OP, CP)
    wb  = jnp.concatenate([_pack_weight(weights['b2b'], OP, CP),
                           _pack_weight(weights['b2a'], OP, CP)], axis=0)
    wc  = jnp.concatenate([_pack_weight(weights['c2c'], OP, CP),
                           _pack_weight(weights['c2b'], OP, CP)], axis=0)
    wab = _pack_weight(weights['a2b'], OP, CP)
    wbc = _pack_weight(weights['b2c'], OP, CP)

    gabT = jnp.asarray(pool_pad_flat_T(Ha, Wa, Hb, Wb, rp, nb))   # (nb*hwa, nb*hwb)
    gbcT = jnp.asarray(pool_pad_flat_T(Hb, Wb, Hc, Wc, rp, nb))   # (nb*hwb, nb*hwc)
    ubaT = jnp.asarray(upsample_flat_T(Hb, Wb, Ha, Wa, rp, nb))   # (Ltb, Lta)
    ucbT = jnp.asarray(upsample_flat_T(Hc, Wc, Hb, Wb, rp, nb))   # (Ltc, Ltb)

    kernel = _make_kernel(KH, KW, OP, Wpa, Wpb, Wpc, Lta, Ltb, Ltc)
    const2d = lambda shape: pl.BlockSpec(shape, lambda n: (0, 0))

    oa, ob, oc = pl.pallas_call(
        kernel,
        grid=(nblk,),
        in_specs=[
            pl.BlockSpec((1, CP, nb * hwa), lambda n: (n, 0, 0)),
            pl.BlockSpec((1, CP, nb * hwb), lambda n: (n, 0, 0)),
            pl.BlockSpec((1, CP, nb * hwc), lambda n: (n, 0, 0)),
            const2d((OP, KH * KW * CP)),          # a2a
            const2d((2 * OP, KH * KW * CP)),      # [b2b ; b2a]
            const2d((2 * OP, KH * KW * CP)),      # [c2c ; c2b]
            const2d((OP, KH * KW * CP)),          # a2b
            const2d((OP, KH * KW * CP)),          # b2c
            const2d((nb * hwa, nb * hwb)),        # pool a -> b grid
            const2d((nb * hwb, nb * hwc)),        # pool b -> c grid
            const2d((Ltb, Lta)),                  # upsample b -> a grid
            const2d((Ltc, Ltb)),                  # upsample c -> b grid
        ],
        out_specs=(
            pl.BlockSpec((1, OP, Lta), lambda n: (n, 0, 0)),
            pl.BlockSpec((1, OP, Ltb), lambda n: (n, 0, 0)),
            pl.BlockSpec((1, OP, Ltc), lambda n: (n, 0, 0)),
        ),
        out_shape=(jax.ShapeDtypeStruct((nblk, OP, Lta), a.dtype),
                   jax.ShapeDtypeStruct((nblk, OP, Ltb), a.dtype),
                   jax.ShapeDtypeStruct((nblk, OP, Ltc), a.dtype)),
        compiler_params=pltpu.CompilerParams(dimension_semantics=("parallel",)),
    )(af, bf, cf, wa, wb, wc, wab, wbc, gabT, gbcT, ubaT, ucbT)

    A = _unpack_output(oa, Ha, Wa, rp, nb, Oa)
    B = _unpack_output(ob, Hb, Wb, rp, nb, Ol)
    C = _unpack_output(oc, Hc, Wc, rp, nb, Ol)
    return A, B, C


# ---------------------------------------------------------------------------
# Pure-JAX reference of OctaveCR.forward (for validation).
# ---------------------------------------------------------------------------

def reference(a, b, c, weights):
    rp = weights['a2a'].shape[-1] // 2
    dn = ('NCHW', 'OIHW', 'NCHW')
    hp = jax.lax.Precision.HIGHEST

    rpad = lambda x: jnp.pad(x, ((0, 0), (0, 0), (rp, rp), (rp, rp)), mode='reflect')
    conv = lambda x, w: jax.lax.conv_general_dilated(
        rpad(x), w, (1, 1), 'VALID', dimension_numbers=dn, precision=hp)

    def apool(x, oh, ow):
        Ph = jnp.asarray(adaptive_avg_matrix(oh, x.shape[2]))
        Pw = jnp.asarray(adaptive_avg_matrix(ow, x.shape[3]))
        return jnp.einsum('Hh,nchw,Ww->ncHW', Ph, x, Pw, precision=hp)

    def upsample(x, oh, ow):
        Uh = jnp.asarray(bilinear_matrix(oh, x.shape[2]))
        Uw = jnp.asarray(bilinear_matrix(ow, x.shape[3]))
        return jnp.einsum('Hh,nchw,Ww->ncHW', Uh, x, Uw, precision=hp)

    Ha, Wa = a.shape[2:]
    Hb, Wb = b.shape[2:]
    Hc, Wc = c.shape[2:]
    a2a = conv(a, weights['a2a'])
    b2b = conv(b, weights['b2b'])
    c2c = conv(c, weights['c2c'])
    a2b = conv(apool(a, Hb, Wb), weights['a2b'])
    b2c = conv(apool(b, Hc, Wc), weights['b2c'])
    b2a = upsample(conv(b, weights['b2a']), Ha, Wa)
    c2b = upsample(conv(c, weights['c2b']), Hb, Wb)
    A = jax.nn.relu(a2a + b2a)
    B = jax.nn.relu(b2b + a2b + c2b)
    C = jax.nn.relu(c2c + b2c)
    return A, B, C


if __name__ == "__main__":
    key = jax.random.PRNGKey(0)
    N = 4
    in_channels, out_channels = 8, 8
    alpha = 0.25            # alpha=0.5 (module default) gives 0 high channels
    k = 3
    H = W = 16

    cl_in = int(alpha * in_channels)            # 2
    ca_in = in_channels - 2 * cl_in             # 4
    cl_out = int(alpha * out_channels)          # 2
    ca_out = out_channels - 2 * cl_out          # 4

    keys = jax.random.split(key, 10)
    a = jax.random.normal(keys[0], (N, ca_in, H, W), jnp.float32)
    b = jax.random.normal(keys[1], (N, cl_in, H // 2, W // 2), jnp.float32)
    c = jax.random.normal(keys[2], (N, cl_in, H // 4, W // 4), jnp.float32)

    def init_w(kk, cout, cin):
        bound = 1.0 / np.sqrt(cin * k * k)
        return jax.random.uniform(kk, (cout, cin, k, k), jnp.float32, -bound, bound)

    weights = {
        'a2a': init_w(keys[3], ca_out, ca_in),
        'b2b': init_w(keys[4], cl_out, cl_in),
        'c2c': init_w(keys[5], cl_out, cl_in),
        'a2b': init_w(keys[6], cl_out, ca_in),
        'b2a': init_w(keys[7], ca_out, cl_in),
        'b2c': init_w(keys[8], cl_out, cl_in),
        'c2b': init_w(keys[9], cl_out, cl_in),
    }

    A, B, C = octave_cr_forward(a, b, c, weights, images_per_block=2)
    A, B, C = jax.block_until_ready((A, B, C))

    Ar, Br, Cr = reference(a, b, c, weights)
    Ar, Br, Cr = jax.block_until_ready((Ar, Br, Cr))

    assert A.shape == (N, ca_out, H, W)
    assert B.shape == (N, cl_out, H // 2, W // 2)
    assert C.shape == (N, cl_out, H // 4, W // 4)
    np.testing.assert_allclose(np.asarray(A), np.asarray(Ar), rtol=2e-4, atol=2e-4)
    np.testing.assert_allclose(np.asarray(B), np.asarray(Br), rtol=2e-4, atol=2e-4)
    np.testing.assert_allclose(np.asarray(C), np.asarray(Cr), rtol=2e-4, atol=2e-4)

    print("KERNEL_OK")
</pallas_src>

<mosaic_0001>
module attributes {stable_mosaic.version = 11 : i64} {
  func.func @kernel(%arg0: i32, %arg1: memref<1x8x648xf32, #tpu.memory_space<vmem>>, %arg2: memref<1x8x200xf32, #tpu.memory_space<vmem>>, %arg3: memref<1x8x72xf32, #tpu.memory_space<vmem>>, %arg4: memref<8x72xf32, #tpu.memory_space<vmem>>, %arg5: memref<16x72xf32, #tpu.memory_space<vmem>>, %arg6: memref<16x72xf32, #tpu.memory_space<vmem>>, %arg7: memref<8x72xf32, #tpu.memory_space<vmem>>, %arg8: memref<8x72xf32, #tpu.memory_space<vmem>>, %arg9: memref<648x200xf32, #tpu.memory_space<vmem>>, %arg10: memref<200x72xf32, #tpu.memory_space<vmem>>, %arg11: memref<178x610xf32, #tpu.memory_space<vmem>>, %arg12: memref<58x178xf32, #tpu.memory_space<vmem>>, %arg13: memref<1x8x610xf32, #tpu.memory_space<vmem>>, %arg14: memref<1x8x178xf32, #tpu.memory_space<vmem>>, %arg15: memref<1x8x58xf32, #tpu.memory_space<vmem>>) attributes {dimension_semantics = [#tpu.dimension_semantics<parallel>], iteration_bounds = array<i64: 2>, scalar_prefetch = 0 : i64, scratch_operands = 0 : i64, tpu.core_type = #tpu.core_type<tc>, window_params = [{transform_indices = @transform_0, window_bounds = array<i64: 1, 8, 648>}, {transform_indices = @transform_1, window_bounds = array<i64: 1, 8, 200>}, {transform_indices = @transform_2, window_bounds = array<i64: 1, 8, 72>}, {pipeline_mode = #tpu.pipeline_mode<synchronous>, transform_indices = @transform_3, window_bounds = array<i64: 8, 72>}, {pipeline_mode = #tpu.pipeline_mode<synchronous>, transform_indices = @transform_4, window_bounds = array<i64: 16, 72>}, {pipeline_mode = #tpu.pipeline_mode<synchronous>, transform_indices = @transform_5, window_bounds = array<i64: 16, 72>}, {pipeline_mode = #tpu.pipeline_mode<synchronous>, transform_indices = @transform_6, window_bounds = array<i64: 8, 72>}, {pipeline_mode = #tpu.pipeline_mode<synchronous>, transform_indices = @transform_7, window_bounds = array<i64: 8, 72>}, {pipeline_mode = #tpu.pipeline_mode<synchronous>, transform_indices = @transform_8, window_bounds = array<i64: 648, 200>}, {pipeline_mode = #tpu.pipeline_mode<synchronous>, transform_indices = @transform_9, window_bounds = array<i64: 200, 72>}, {pipeline_mode = #tpu.pipeline_mode<synchronous>, transform_indices = @transform_10, window_bounds = array<i64: 178, 610>}, {pipeline_mode = #tpu.pipeline_mode<synchronous>, transform_indices = @transform_11, window_bounds = array<i64: 58, 178>}, {transform_indices = @transform_12, window_bounds = array<i64: 1, 8, 610>}, {transform_indices = @transform_13, window_bounds = array<i64: 1, 8, 178>}, {transform_indices = @transform_14, window_bounds = array<i64: 1, 8, 58>}]} {
    %c0 = arith.constant 0 : index
    %c0_0 = arith.constant 0 : index
    %c0_1 = arith.constant 0 : index
    %0 = vector.load %arg1[%c0, %c0_0, %c0_1] : memref<1x8x648xf32, #tpu.memory_space<vmem>>, vector<1x8x648xf32>
    %1 = vector.shape_cast %0 : vector<1x8x648xf32> to vector<8x648xf32>
    %c0_2 = arith.constant 0 : index
    %c0_3 = arith.constant 0 : index
    %c0_4 = arith.constant 0 : index
    %2 = vector.load %arg2[%c0_2, %c0_3, %c0_4] : memref<1x8x200xf32, #tpu.memory_space<vmem>>, vector<1x8x200xf32>
    %3 = vector.shape_cast %2 : vector<1x8x200xf32> to vector<8x200xf32>
    %c0_5 = arith.constant 0 : index
    %c0_6 = arith.constant 0 : index
    %c0_7 = arith.constant 0 : index
    %4 = vector.load %arg3[%c0_5, %c0_6, %c0_7] : memref<1x8x72xf32, #tpu.memory_space<vmem>>, vector<1x8x72xf32>
    %5 = vector.shape_cast %4 : vector<1x8x72xf32> to vector<8x72xf32>
    %c0_8 = arith.constant 0 : index
    %c0_9 = arith.constant 0 : index
    %6 = vector.load %arg9[%c0_8, %c0_9] : memref<648x200xf32, #tpu.memory_space<vmem>>, vector<648x200xf32>
    %cst = arith.constant dense<0.000000e+00> : vector<8x200xf32>
    %7 = tpu.matmul %1, %6, %cst {dimension_numbers = #tpu.dot_dimension_numbers<[1], [0], [0], [1], [0, 0, 1, 1], [], []>} : vector<8x648xf32>, vector<648x200xf32>, vector<8x200xf32> -> vector<8x200xf32>
    %c0_10 = arith.constant 0 : index
    %c0_11 = arith.constant 0 : index
    %8 = vector.load %arg10[%c0_10, %c0_11] : memref<200x72xf32, #tpu.memory_space<vmem>>, vector<200x72xf32>
    %cst_12 = arith.constant dense<0.000000e+00> : vector<8x72xf32>
    %9 = tpu.matmul %3, %8, %cst_12 {dimension_numbers = #tpu.dot_dimension_numbers<[1], [0], [0], [1], [0, 0, 1, 1], [], []>} : vector<8x200xf32>, vector<200x72xf32>, vector<8x72xf32> -> vector<8x72xf32>
    %c0_13 = arith.constant 0 : index
    %c0_14 = arith.constant 0 : index
    %10 = vector.load %arg4[%c0_13, %c0_14] : memref<8x72xf32, #tpu.memory_space<vmem>>, vector<8x72xf32>
    %11 = vector.extract_strided_slice %1 {offsets = [0, 0], sizes = [8, 610], strides = [1, 1]} : vector<8x648xf32> to vector<8x610xf32>
    %12 = vector.extract_strided_slice %1 {offsets = [0, 1], sizes = [8, 610], strides = [1, 1]} : vector<8x648xf32> to vector<8x610xf32>
    %13 = vector.extract_strided_slice %1 {offsets = [0, 2], sizes = [8, 610], strides = [1, 1]} : vector<8x648xf32> to vector<8x610xf32>
    %14 = vector.extract_strided_slice %1 {offsets = [0, 18], sizes = [8, 610], strides = [1, 1]} : vector<8x648xf32> to vector<8x610xf32>
    %15 = vector.extract_strided_slice %1 {offsets = [0, 19], sizes = [8, 610], strides = [1, 1]} : vector<8x648xf32> to vector<8x610xf32>
    %16 = vector.extract_strided_slice %1 {offsets = [0, 20], sizes = [8, 610], strides = [1, 1]} : vector<8x648xf32> to vector<8x610xf32>
    %17 = vector.extract_strided_slice %1 {offsets = [0, 36], sizes = [8, 610], strides = [1, 1]} : vector<8x648xf32> to vector<8x610xf32>
    %18 = vector.extract_strided_slice %1 {offsets = [0, 37], sizes = [8, 610], strides = [1, 1]} : vector<8x648xf32> to vector<8x610xf32>
    %19 = vector.extract_strided_slice %1 {offsets = [0, 38], sizes = [8, 610], strides = [1, 1]} : vector<8x648xf32> to vector<8x610xf32>
    %20 = tpu.concatenate %11, %12, %13, %14, %15, %16, %17, %18, %19 in 0 : vector<8x610xf32>, vector<8x610xf32>, vector<8x610xf32>, vector<8x610xf32>, vector<8x610xf32>, vector<8x610xf32>, vector<8x610xf32>, vector<8x610xf32>, vector<8x610xf32> -> vector<72x610xf32>
    %cst_15 = arith.constant dense<0.000000e+00> : vector<8x610xf32>
    %21 = tpu.matmul %10, %20, %cst_15 {dimension_numbers = #tpu.dot_dimension_numbers<[1], [0], [0], [1], [0, 0, 1, 1], [], []>} : vector<8x72xf32>, vector<72x610xf32>, vector<8x610xf32> -> vector<8x610xf32>
    %c0_16 = arith.constant 0 : index
    %c0_17 = arith.constant 0 : index
    %22 = vector.load %arg5[%c0_16, %c0_17] : memref<16x72xf32, #tpu.memory_space<vmem>>, vector<16x72xf32>
    %23 = vector.extract_strided_slice %3 {offsets = [0, 0], sizes = [8, 178], strides = [1, 1]} : vector<8x200xf32> to vector<8x178xf32>
    %24 = vector.extract_strided_slice %3 {offsets = [0, 1], sizes = [8, 178], strides = [1, 1]} : vector<8x200xf32> to vector<8x178xf32>
    %25 = vector.extract_strided_slice %3 {offsets = [0, 2], sizes = [8, 178], strides = [1, 1]} : vector<8x200xf32> to vector<8x178xf32>
    %26 = vector.extract_strided_slice %3 {offsets = [0, 10], sizes = [8, 178], strides = [1, 1]} : vector<8x200xf32> to vector<8x178xf32>
    %27 = vector.extract_strided_slice %3 {offsets = [0, 11], sizes = [8, 178], strides = [1, 1]} : vector<8x200xf32> to vector<8x178xf32>
    %28 = vector.extract_strided_slice %3 {offsets = [0, 12], sizes = [8, 178], strides = [1, 1]} : vector<8x200xf32> to vector<8x178xf32>
    %29 = vector.extract_strided_slice %3 {offsets = [0, 20], sizes = [8, 178], strides = [1, 1]} : vector<8x200xf32> to vector<8x178xf32>
    %30 = vector.extract_strided_slice %3 {offsets = [0, 21], sizes = [8, 178], strides = [1, 1]} : vector<8x200xf32> to vector<8x178xf32>
    %31 = vector.extract_strided_slice %3 {offsets = [0, 22], sizes = [8, 178], strides = [1, 1]} : vector<8x200xf32> to vector<8x178xf32>
    %32 = tpu.concatenate %23, %24, %25, %26, %27, %28, %29, %30, %31 in 0 : vector<8x178xf32>, vector<8x178xf32>, vector<8x178xf32>, vector<8x178xf32>, vector<8x178xf32>, vector<8x178xf32>, vector<8x178xf32>, vector<8x178xf32>, vector<8x178xf32> -> vector<72x178xf32>
    %cst_18 = arith.constant dense<0.000000e+00> : vector<16x178xf32>
    %33 = tpu.matmul %22, %32, %cst_18 {dimension_numbers = #tpu.dot_dimension_numbers<[1], [0], [0], [1], [0, 0, 1, 1], [], []>} : vector<16x72xf32>, vector<72x178xf32>, vector<16x178xf32> -> vector<16x178xf32>
    %c0_19 = arith.constant 0 : index
    %c0_20 = arith.constant 0 : index
    %34 = vector.load %arg6[%c0_19, %c0_20] : memref<16x72xf32, #tpu.memory_space<vmem>>, vector<16x72xf32>
    %35 = vector.extract_strided_slice %5 {offsets = [0, 0], sizes = [8, 58], strides = [1, 1]} : vector<8x72xf32> to vector<8x58xf32>
    %36 = vector.extract_strided_slice %5 {offsets = [0, 1], sizes = [8, 58], strides = [1, 1]} : vector<8x72xf32> to vector<8x58xf32>
    %37 = vector.extract_strided_slice %5 {offsets = [0, 2], sizes = [8, 58], strides = [1, 1]} : vector<8x72xf32> to vector<8x58xf32>
    %38 = vector.extract_strided_slice %5 {offsets = [0, 6], sizes = [8, 58], strides = [1, 1]} : vector<8x72xf32> to vector<8x58xf32>
    %39 = vector.extract_strided_slice %5 {offsets = [0, 7], sizes = [8, 58], strides = [1, 1]} : vector<8x72xf32> to vector<8x58xf32>
    %40 = vector.extract_strided_slice %5 {offsets = [0, 8], sizes = [8, 58], strides = [1, 1]} : vector<8x72xf32> to vector<8x58xf32>
    %41 = vector.extract_strided_slice %5 {offsets = [0, 12], sizes = [8, 58], strides = [1, 1]} : vector<8x72xf32> to vector<8x58xf32>
    %42 = vector.extract_strided_slice %5 {offsets = [0, 13], sizes = [8, 58], strides = [1, 1]} : vector<8x72xf32> to vector<8x58xf32>
    %43 = vector.extract_strided_slice %5 {offsets = [0, 14], sizes = [8, 58], strides = [1, 1]} : vector<8x72xf32> to vector<8x58xf32>
    %44 = tpu.concatenate %35, %36, %37, %38, %39, %40, %41, %42, %43 in 0 : vector<8x58xf32>, vector<8x58xf32>, vector<8x58xf32>, vector<8x58xf32>, vector<8x58xf32>, vector<8x58xf32>, vector<8x58xf32>, vector<8x58xf32>, vector<8x58xf32> -> vector<72x58xf32>
    %cst_21 = arith.constant dense<0.000000e+00> : vector<16x58xf32>
    %45 = tpu.matmul %34, %44, %cst_21 {dimension_numbers = #tpu.dot_dimension_numbers<[1], [0], [0], [1], [0, 0, 1, 1], [], []>} : vector<16x72xf32>, vector<72x58xf32>, vector<16x58xf32> -> vector<16x58xf32>
    %c0_22 = arith.constant 0 : index
    %c0_23 = arith.constant 0 : index
    %46 = vector.load %arg7[%c0_22, %c0_23] : memref<8x72xf32, #tpu.memory_space<vmem>>, vector<8x72xf32>
    %47 = vector.extract_strided_slice %7 {offsets = [0, 0], sizes = [8, 178], strides = [1, 1]} : vector<8x200xf32> to vector<8x178xf32>
    %48 = vector.extract_strided_slice %7 {offsets = [0, 1], sizes = [8, 178], strides = [1, 1]} : vector<8x200xf32> to vector<8x178xf32>
    %49 = vector.extract_strided_slice %7 {offsets = [0, 2], sizes = [8, 178], strides = [1, 1]} : vector<8x200xf32> to vector<8x178xf32>
    %50 = vector.extract_strided_slice %7 {offsets = [0, 10], sizes = [8, 178], strides = [1, 1]} : vector<8x200xf32> to vector<8x178xf32>
    %51 = vector.extract_strided_slice %7 {offsets = [0, 11], sizes = [8, 178], strides = [1, 1]} : vector<8x200xf32> to vector<8x178xf32>
    %52 = vector.extract_strided_slice %7 {offsets = [0, 12], sizes = [8, 178], strides = [1, 1]} : vector<8x200xf32> to vector<8x178xf32>
    %53 = vector.extract_strided_slice %7 {offsets = [0, 20], sizes = [8, 178], strides = [1, 1]} : vector<8x200xf32> to vector<8x178xf32>
    %54 = vector.extract_strided_slice %7 {offsets = [0, 21], sizes = [8, 178], strides = [1, 1]} : vector<8x200xf32> to vector<8x178xf32>
    %55 = vector.extract_strided_slice %7 {offsets = [0, 22], sizes = [8, 178], strides = [1, 1]} : vector<8x200xf32> to vector<8x178xf32>
    %56 = tpu.concatenate %47, %48, %49, %50, %51, %52, %53, %54, %55 in 0 : vector<8x178xf32>, vector<8x178xf32>, vector<8x178xf32>, vector<8x178xf32>, vector<8x178xf32>, vector<8x178xf32>, vector<8x178xf32>, vector<8x178xf32>, vector<8x178xf32> -> vector<72x178xf32>
    %cst_24 = arith.constant dense<0.000000e+00> : vector<8x178xf32>
    %57 = tpu.matmul %46, %56, %cst_24 {dimension_numbers = #tpu.dot_dimension_numbers<[1], [0], [0], [1], [0, 0, 1, 1], [], []>} : vector<8x72xf32>, vector<72x178xf32>, vector<8x178xf32> -> vector<8x178xf32>
    %c0_25 = arith.constant 0 : index
    %c0_26 = arith.constant 0 : index
    %58 = vector.load %arg8[%c0_25, %c0_26] : memref<8x72xf32, #tpu.memory_space<vmem>>, vector<8x72xf32>
    %59 = vector.extract_strided_slice %9 {offsets = [0, 0], sizes = [8, 58], strides = [1, 1]} : vector<8x72xf32> to vector<8x58xf32>
    %60 = vector.extract_strided_slice %9 {offsets = [0, 1], sizes = [8, 58], strides = [1, 1]} : vector<8x72xf32> to vector<8x58xf32>
    %61 = vector.extract_strided_slice %9 {offsets = [0, 2], sizes = [8, 58], strides = [1, 1]} : vector<8x72xf32> to vector<8x58xf32>
    %62 = vector.extract_strided_slice %9 {offsets = [0, 6], sizes = [8, 58], strides = [1, 1]} : vector<8x72xf32> to vector<8x58xf32>
    %63 = vector.extract_strided_slice %9 {offsets = [0, 7], sizes = [8, 58], strides = [1, 1]} : vector<8x72xf32> to vector<8x58xf32>
    %64 = vector.extract_strided_slice %9 {offsets = [0, 8], sizes = [8, 58], strides = [1, 1]} : vector<8x72xf32> to vector<8x58xf32>
    %65 = vector.extract_strided_slice %9 {offsets = [0, 12], sizes = [8, 58], strides = [1, 1]} : vector<8x72xf32> to vector<8x58xf32>
    %66 = vector.extract_strided_slice %9 {offsets = [0, 13], sizes = [8, 58], strides = [1, 1]} : vector<8x72xf32> to vector<8x58xf32>
    %67 = vector.extract_strided_slice %9 {offsets = [0, 14], sizes = [8, 58], strides = [1, 1]} : vector<8x72xf32> to vector<8x58xf32>
    %68 = tpu.concatenate %59, %60, %61, %62, %63, %64, %65, %66, %67 in 0 : vector<8x58xf32>, vector<8x58xf32>, vector<8x58xf32>, vector<8x58xf32>, vector<8x58xf32>, vector<8x58xf32>, vector<8x58xf32>, vector<8x58xf32>, vector<8x58xf32> -> vector<72x58xf32>
    %cst_27 = arith.constant dense<0.000000e+00> : vector<8x58xf32>
    %69 = tpu.matmul %58, %68, %cst_27 {dimension_numbers = #tpu.dot_dimension_numbers<[1], [0], [0], [1], [0, 0, 1, 1], [], []>} : vector<8x72xf32>, vector<72x58xf32>, vector<8x58xf32> -> vector<8x58xf32>
    %70 = vector.extract_strided_slice %33 {offsets = [0, 0], sizes = [8, 178], strides = [1, 1]} : vector<16x178xf32> to vector<8x178xf32>
    %71 = vector.extract_strided_slice %33 {offsets = [8, 0], sizes = [8, 178], strides = [1, 1]} : vector<16x178xf32> to vector<8x178xf32>
    %72 = vector.extract_strided_slice %45 {offsets = [0, 0], sizes = [8, 58], strides = [1, 1]} : vector<16x58xf32> to vector<8x58xf32>
    %73 = vector.extract_strided_slice %45 {offsets = [8, 0], sizes = [8, 58], strides = [1, 1]} : vector<16x58xf32> to vector<8x58xf32>
    %c0_28 = arith.constant 0 : index
    %c0_29 = arith.constant 0 : index
    %74 = vector.load %arg11[%c0_28, %c0_29] : memref<178x610xf32, #tpu.memory_space<vmem>>, vector<178x610xf32>
    %cst_30 = arith.constant dense<0.000000e+00> : vector<8x610xf32>
    %75 = tpu.matmul %71, %74, %cst_30 {dimension_numbers = #tpu.dot_dimension_numbers<[1], [0], [0], [1], [0, 0, 1, 1], [], []>} : vector<8x178xf32>, vector<178x610xf32>, vector<8x610xf32> -> vector<8x610xf32>
    %c0_31 = arith.constant 0 : index
    %c0_32 = arith.constant 0 : index
    %76 = vector.load %arg12[%c0_31, %c0_32] : memref<58x178xf32, #tpu.memory_space<vmem>>, vector<58x178xf32>
    %cst_33 = arith.constant dense<0.000000e+00> : vector<8x178xf32>
    %77 = tpu.matmul %73, %76, %cst_33 {dimension_numbers = #tpu.dot_dimension_numbers<[1], [0], [0], [1], [0, 0, 1, 1], [], []>} : vector<8x58xf32>, vector<58x178xf32>, vector<8x178xf32> -> vector<8x178xf32>
    %78 = arith.addf %21, %75 : vector<8x610xf32>
    %cst_34 = arith.constant 0.000000e+00 : f32
    %79 = vector.broadcast %cst_34 : f32 to vector<8x610xf32>
    %80 = arith.maximumf %78, %79 : vector<8x610xf32>
    %c0_35 = arith.constant 0 : index
    %c0_36 = arith.constant 0 : index
    %c0_37 = arith.constant 0 : index
    %81 = vector.load %arg13[%c0_35, %c0_36, %c0_37] : memref<1x8x610xf32, #tpu.memory_space<vmem>>, vector<1x8x610xf32>
    %82 = vector.shape_cast %81 : vector<1x8x610xf32> to vector<8x610xf32>
    %83 = vector.shape_cast %80 : vector<8x610xf32> to vector<1x8x610xf32>
    tpu.vector_store %arg13[%c0_35, %c0_36, %c0_37], %83 {strides = array<i32>} : memref<1x8x610xf32, #tpu.memory_space<vmem>>, vector<1x8x610xf32>,
    %84 = arith.addf %70, %57 : vector<8x178xf32>
    %85 = arith.addf %84, %77 : vector<8x178xf32>
    %cst_38 = arith.constant 0.000000e+00 : f32
    %86 = vector.broadcast %cst_38 : f32 to vector<8x178xf32>
    %87 = arith.maximumf %85, %86 : vector<8x178xf32>
    %c0_39 = arith.constant 0 : index
    %c0_40 = arith.constant 0 : index
    %c0_41 = arith.constant 0 : index
    %88 = vector.load %arg14[%c0_39, %c0_40, %c0_41] : memref<1x8x178xf32, #tpu.memory_space<vmem>>, vector<1x8x178xf32>
    %89 = vector.shape_cast %88 : vector<1x8x178xf32> to vector<8x178xf32>
    %90 = vector.shape_cast %87 : vector<8x178xf32> to vector<1x8x178xf32>
    tpu.vector_store %arg14[%c0_39, %c0_40, %c0_41], %90 {strides = array<i32>} : memref<1x8x178xf32, #tpu.memory_space<vmem>>, vector<1x8x178xf32>,
    %91 = arith.addf %72, %69 : vector<8x58xf32>
    %cst_42 = arith.constant 0.000000e+00 : f32
    %92 = vector.broadcast %cst_42 : f32 to vector<8x58xf32>
    %93 = arith.maximumf %91, %92 : vector<8x58xf32>
    %c0_43 = arith.constant 0 : index
    %c0_44 = arith.constant 0 : index
    %c0_45 = arith.constant 0 : index
    %94 = vector.load %arg15[%c0_43, %c0_44, %c0_45] : memref<1x8x58xf32, #tpu.memory_space<vmem>>, vector<1x8x58xf32>
    %95 = vector.shape_cast %94 : vector<1x8x58xf32> to vector<8x58xf32>
    %96 = vector.shape_cast %93 : vector<8x58xf32> to vector<1x8x58xf32>
    tpu.vector_store %arg15[%c0_43, %c0_44, %c0_45], %96 {strides = array<i32>} : memref<1x8x58xf32, #tpu.memory_space<vmem>>, vector<1x8x58xf32>,
    return
  }
  func.func @transform_0(%arg0: i32) -> (i32, i32, i32) {
    %c0_i32 = arith.constant 0 : i32
    %c0_i32_0 = arith.constant 0 : i32
    %c0_i32_1 = arith.constant 0 : i32
    return %arg0, %c0_i32, %c0_i32_0 : i32, i32, i32
  }
  func.func @transform_1(%arg0: i32) -> (i32, i32, i32) {
    %c0_i32 = arith.constant 0 : i32
    %c0_i32_0 = arith.constant 0 : i32
    %c0_i32_1 = arith.constant 0 : i32
    return %arg0, %c0_i32, %c0_i32_0 : i32, i32, i32
  }
  func.func @transform_2(%arg0: i32) -> (i32, i32, i32) {
    %c0_i32 = arith.constant 0 : i32
    %c0_i32_0 = arith.constant 0 : i32
    %c0_i32_1 = arith.constant 0 : i32
    return %arg0, %c0_i32, %c0_i32_0 : i32, i32, i32
  }
  func.func @transform_3(%arg0: i32) -> (i32, i32) {
    %c0_i32 = arith.constant 0 : i32
    %c0_i32_0 = arith.constant 0 : i32
    %c0_i32_1 = arith.constant 0 : i32
    return %c0_i32, %c0_i32_0 : i32, i32
  }
  func.func @transform_4(%arg0: i32) -> (i32, i32) {
    %c0_i32 = arith.constant 0 : i32
    %c0_i32_0 = arith.constant 0 : i32
    %c0_i32_1 = arith.constant 0 : i32
    return %c0_i32, %c0_i32_0 : i32, i32
  }
  func.func @transform_5(%arg0: i32) -> (i32, i32) {
    %c0_i32 = arith.constant 0 : i32
    %c0_i32_0 = arith.constant 0 : i32
    %c0_i32_1 = arith.constant 0 : i32
    return %c0_i32, %c0_i32_0 : i32, i32
  }
  func.func @transform_6(%arg0: i32) -> (i32, i32) {
    %c0_i32 = arith.constant 0 : i32
    %c0_i32_0 = arith.constant 0 : i32
    %c0_i32_1 = arith.constant 0 : i32
    return %c0_i32, %c0_i32_0 : i32, i32
  }
  func.func @transform_7(%arg0: i32) -> (i32, i32) {
    %c0_i32 = arith.constant 0 : i32
    %c0_i32_0 = arith.constant 0 : i32
    %c0_i32_1 = arith.constant 0 : i32
    return %c0_i32, %c0_i32_0 : i32, i32
  }
  func.func @transform_8(%arg0: i32) -> (i32, i32) {
    %c0_i32 = arith.constant 0 : i32
    %c0_i32_0 = arith.constant 0 : i32
    %c0_i32_1 = arith.constant 0 : i32
    return %c0_i32, %c0_i32_0 : i32, i32
  }
  func.func @transform_9(%arg0: i32) -> (i32, i32) {
    %c0_i32 = arith.constant 0 : i32
    %c0_i32_0 = arith.constant 0 : i32
    %c0_i32_1 = arith.constant 0 : i32
    return %c0_i32, %c0_i32_0 : i32, i32
  }
  func.func @transform_10(%arg0: i32) -> (i32, i32) {
    %c0_i32 = arith.constant 0 : i32
    %c0_i32_0 = arith.constant 0 : i32
    %c0_i32_1 = arith.constant 0 : i32
    return %c0_i32, %c0_i32_0 : i32, i32
  }
  func.func @transform_11(%arg0: i32) -> (i32, i32) {
    %c0_i32 = arith.constant 0 : i32
    %c0_i32_0 = arith.constant 0 : i32
    %c0_i32_1 = arith.constant 0 : i32
    return %c0_i32, %c0_i32_0 : i32, i32
  }
  func.func @transform_12(%arg0: i32) -> (i32, i32, i32) {
    %c0_i32 = arith.constant 0 : i32
    %c0_i32_0 = arith.constant 0 : i32
    %c0_i32_1 = arith.constant 0 : i32
    return %arg0, %c0_i32, %c0_i32_0 : i32, i32, i32
  }
  func.func @transform_13(%arg0: i32) -> (i32, i32, i32) {
    %c0_i32 = arith.constant 0 : i32
    %c0_i32_0 = arith.constant 0 : i32
    %c0_i32_1 = arith.constant 0 : i32
    return %arg0, %c0_i32, %c0_i32_0 : i32, i32, i32
  }
  func.func @transform_14(%arg0: i32) -> (i32, i32, i32) {
    %c0_i32 = arith.constant 0 : i32
    %c0_i32_0 = arith.constant 0 : i32
    %c0_i32_1 = arith.constant 0 : i32
    return %arg0, %c0_i32, %c0_i32_0 : i32, i32, i32
  }
}

</mosaic_0001>

<llo_original>
// kernel: octave_cr_forward.1
$region0: #{octave_cr_forward.1}
  #allocation0 [shape = 'u32[]', space=smem, size = 0x4, offset = 0x4, fixed_abs, tag = 'smem constant byte address 0x4 - core index']
  #allocation1 [shape = 'u32[72,128]{1,0:T(1,128)}', space=vmem, size = 0x9000, scoped, tag = 'internal scratch']
  %s0 = inlined_call_operand.vmem [shape: f32[2,8,648], index: 0, kind: input, shape index: {}]
  %s1 = inlined_call_operand.vmem [shape: f32[2,8,200], index: 1, kind: input, shape index: {}]
  %s2 = inlined_call_operand.vmem [shape: f32[2,8,72], index: 2, kind: input, shape index: {}]
  %s3 = inlined_call_operand.vmem [shape: f32[8,72], index: 3, kind: input, shape index: {}]
  %s4 = inlined_call_operand.vmem [shape: f32[16,72], index: 4, kind: input, shape index: {}]
  %s5 = inlined_call_operand.vmem [shape: f32[16,72], index: 5, kind: input, shape index: {}]
  %s6 = inlined_call_operand.vmem [shape: f32[8,72], index: 6, kind: input, shape index: {}]
  %s7 = inlined_call_operand.vmem [shape: f32[8,72], index: 7, kind: input, shape index: {}]
  %s8 = inlined_call_operand.vmem [shape: f32[648,200], index: 8, kind: input, shape index: {}]
  %s9 = inlined_call_operand.vmem [shape: f32[200,72], index: 9, kind: input, shape index: {}]
  %s10 = inlined_call_operand.vmem [shape: f32[178,610], index: 10, kind: input, shape index: {}]
  %s11 = inlined_call_operand.vmem [shape: f32[58,178], index: 11, kind: input, shape index: {}]
  %s12 = inlined_call_operand.vmem [shape: f32[2,8,610], index: 12, kind: output, shape index: {0}]
  %s13 = inlined_call_operand.vmem [shape: f32[2,8,178], index: 13, kind: output, shape index: {1}]
  %s14 = inlined_call_operand.vmem [shape: f32[2,8,58], index: 14, kind: output, shape index: {2}]
  %15 = xla_tuple %s12, %s13, %s14
  %s16 = sld [smem:[#allocation0]]
  $region97: #{octave_cr_forward.1} parent=0
    _
  %s18 = ssub.s32 1, %s16
  %s19 = scalar_select 0, %s18, %s16
  loop: start=0, step=1, limit=4
  $region2: #{octave_cr_forward.1} parent=0 // loop_pre_header
    _
  $region3: #{octave_cr_forward.1} parent=0 // loop_header
    %s21 = sphi 0, %s25
    %p22 = scmp.ge.s32.totalorder %s21, 4
    %s31 = sphi 0, %s33
    %s34 = sphi 0, %s31
    %s35 = sphi 0, %s34
    %s51 = sphi 0, %s35
    %s57 = sphi 0, %s59
    %s60 = sphi 0, %s57
    %s61 = sphi 0, %s60
    %s77 = sphi 0, %s61
    %s83 = sphi 0, %s85
    %s86 = sphi 0, %s83
    %s87 = sphi 0, %s86
    %s103 = sphi 0, %s87
    %s107 = sphi 0, %s107
    %s109 = sphi 0, %s107
    %s110 = sphi 0, %s109
    %s124 = sphi 0, %s110
    %s128 = sphi 0, %s128
    %s130 = sphi 0, %s128
    %s131 = sphi 0, %s130
    %s145 = sphi 0, %s131
    %s149 = sphi 0, %s149
    %s151 = sphi 0, %s149
    %s152 = sphi 0, %s151
    %s166 = sphi 0, %s152
    %s170 = sphi 0, %s170
    %s172 = sphi 0, %s170
    %s173 = sphi 0, %s172
    %s187 = sphi 0, %s173
    %s191 = sphi 0, %s191
    %s193 = sphi 0, %s191
    %s194 = sphi 0, %s193
    %s208 = sphi 0, %s194
    %s212 = sphi 0, %s212
    %s214 = sphi 0, %s212
    %s215 = sphi 0, %s214
    %s229 = sphi 0, %s215
    %s233 = sphi 0, %s233
    %s235 = sphi 0, %s233
    %s236 = sphi 0, %s235
    %s250 = sphi 0, %s236
    %s254 = sphi 0, %s254
    %s256 = sphi 0, %s254
    %s257 = sphi 0, %s256
    %s271 = sphi 0, %s257
    %s275 = sphi 0, %s275
    %s277 = sphi 0, %s275
    %s278 = sphi 0, %s277
    %s292 = sphi 0, %s278
    %s298 = sphi 0, %s300
    %s301 = sphi 0, %s298
    %s302 = sphi 0, %s301
    %s318 = sphi 0, %s302
    %s324 = sphi 0, %s326
    %s327 = sphi 0, %s324
    %s328 = sphi 0, %s327
    %s344 = sphi 0, %s328
    %s350 = sphi 0, %s352
    %s353 = sphi 0, %s350
    %s354 = sphi 0, %s353
    %s370 = sphi 0, %s354
  $region4: #{octave_cr_forward.1} parent=0 // loop_header_branch
    %24 = sbr.rel (%p22) target = $region8
  $region5: #{octave_cr_forward.1} parent=0 // loop_body
    %s26 = ssub.s32 %s21, 1
    %s27 = ssub.s32 %s21, 2
    %s28 = sadd.s32 %s21, 1
    %s29 = ssub.s32 %s21, %s28
    %p30 = scmp.eq.s32.totalorder %s29, 0
    %s32 = sadd.s32 %s31, 1
    %s33 = scalar_select %p30, %s31, %s32
    %p36 = pneg %p30
    %p37 = scmp.eq.s32.totalorder %s21, 1
    %p38 = por %p36, %p37
    %p39 = scmp.ne.s32.totalorder %s31, %s34
    %p40 = scmp.eq.s32.totalorder %s21, 0
    %p41 = por %p39, %p40
    %p42 = scmp.ne.s32.totalorder %s31, %s34
    %p43 = scmp.eq.s32.totalorder %s26, 1
    %p44 = por %p42, %p43
    %p45 = scmp.ne.s32.totalorder %s34, %s35
    %p46 = scmp.eq.s32.totalorder %s26, 0
    %p47 = por %p45, %p46
    %p48 = scmp.ne.s32.totalorder %s34, %s35
    %p49 = scmp.eq.s32.totalorder %s27, 1
    %p50 = por %p48, %p49
    %p52 = scmp.ne.s32.totalorder %s35, %s51
    %p53 = scmp.eq.s32.totalorder %s27, 0
    %p54 = por %p52, %p53
    %s55 = ssub.s32 %s21, %s28
    %p56 = scmp.eq.s32.totalorder %s55, 0
    %s58 = sadd.s32 %s57, 1
    %s59 = scalar_select %p56, %s57, %s58
    %p62 = pneg %p56
    %p63 = scmp.eq.s32.totalorder %s21, 1
    %p64 = por %p62, %p63
    %p65 = scmp.ne.s32.totalorder %s57, %s60
    %p66 = scmp.eq.s32.totalorder %s21, 0
    %p67 = por %p65, %p66
    %p68 = scmp.ne.s32.totalorder %s57, %s60
    %p69 = scmp.eq.s32.totalorder %s26, 1
    %p70 = por %p68, %p69
    %p71 = scmp.ne.s32.totalorder %s60, %s61
    %p72 = scmp.eq.s32.totalorder %s26, 0
    %p73 = por %p71, %p72
    %p74 = scmp.ne.s32.totalorder %s60, %s61
    %p75 = scmp.eq.s32.totalorder %s27, 1
    %p76 = por %p74, %p75
    %p78 = scmp.ne.s32.totalorder %s61, %s77
    %p79 = scmp.eq.s32.totalorder %s27, 0
    %p80 = por %p78, %p79
    %s81 = ssub.s32 %s21, %s28
    %p82 = scmp.eq.s32.totalorder %s81, 0
    %s84 = sadd.s32 %s83, 1
    %s85 = scalar_select %p82, %s83, %s84
    %p88 = pneg %p82
    %p89 = scmp.eq.s32.totalorder %s21, 1
    %p90 = por %p88, %p89
    %p91 = scmp.ne.s32.totalorder %s83, %s86
    %p92 = scmp.eq.s32.totalorder %s21, 0
    %p93 = por %p91, %p92
    %p94 = scmp.ne.s32.totalorder %s83, %s86
    %p95 = scmp.eq.s32.totalorder %s26, 1
    %p96 = por %p94, %p95
    %p97 = scmp.ne.s32.totalorder %s86, %s87
    %p98 = scmp.eq.s32.totalorder %s26, 0
    %p99 = por %p97, %p98
    %p100 = scmp.ne.s32.totalorder %s86, %s87
    %p101 = scmp.eq.s32.totalorder %s27, 1
    %p102 = por %p100, %p101
    %p104 = scmp.ne.s32.totalorder %s87, %s103
    %p105 = scmp.eq.s32.totalorder %s27, 0
    %p106 = por %p104, %p105
    %s108 = sadd.s32 %s107, 1
    %p111 = scmp.eq.s32.totalorder %s21, 1
    %p112 = scmp.ne.s32.totalorder %s107, %s109
    %p113 = scmp.eq.s32.totalorder %s21, 0
    %p114 = por %p112, %p113
    %p115 = scmp.ne.s32.totalorder %s107, %s109
    %p116 = scmp.eq.s32.totalorder %s26, 1
    %p117 = por %p115, %p116
    %p118 = scmp.ne.s32.totalorder %s109, %s110
    %p119 = scmp.eq.s32.totalorder %s26, 0
    %p120 = por %p118, %p119
    %p121 = scmp.ne.s32.totalorder %s109, %s110
    %p122 = scmp.eq.s32.totalorder %s27, 1
    %p123 = por %p121, %p122
    %p125 = scmp.ne.s32.totalorder %s110, %s124
    %p126 = scmp.eq.s32.totalorder %s27, 0
    %p127 = por %p125, %p126
    %s129 = sadd.s32 %s128, 1
    %p132 = scmp.eq.s32.totalorder %s21, 1
    %p133 = scmp.ne.s32.totalorder %s128, %s130
    %p134 = scmp.eq.s32.totalorder %s21, 0
    %p135 = por %p133, %p134
    %p136 = scmp.ne.s32.totalorder %s128, %s130
    %p137 = scmp.eq.s32.totalorder %s26, 1
    %p138 = por %p136, %p137
    %p139 = scmp.ne.s32.totalorder %s130, %s131
    %p140 = scmp.eq.s32.totalorder %s26, 0
    %p141 = por %p139, %p140
    %p142 = scmp.ne.s32.totalorder %s130, %s131
    %p143 = scmp.eq.s32.totalorder %s27, 1
    %p144 = por %p142, %p143
    %p146 = scmp.ne.s32.totalorder %s131, %s145
    %p147 = scmp.eq.s32.totalorder %s27, 0
    %p148 = por %p146, %p147
    %s150 = sadd.s32 %s149, 1
    %p153 = scmp.eq.s32.totalorder %s21, 1
    %p154 = scmp.ne.s32.totalorder %s149, %s151
    %p155 = scmp.eq.s32.totalorder %s21, 0
    %p156 = por %p154, %p155
    %p157 = scmp.ne.s32.totalorder %s149, %s151
    %p158 = scmp.eq.s32.totalorder %s26, 1
    %p159 = por %p157, %p158
    %p160 = scmp.ne.s32.totalorder %s151, %s152
    %p161 = scmp.eq.s32.totalorder %s26, 0
    %p162 = por %p160, %p161
    %p163 = scmp.ne.s32.totalorder %s151, %s152
    %p164 = scmp.eq.s32.totalorder %s27, 1
    %p165 = por %p163, %p164
    %p167 = scmp.ne.s32.totalorder %s152, %s166
    %p168 = scmp.eq.s32.totalorder %s27, 0
    %p169 = por %p167, %p168
    %s171 = sadd.s32 %s170, 1
    %p174 = scmp.eq.s32.totalorder %s21, 1
    %p175 = scmp.ne.s32.totalorder %s170, %s172
    %p176 = scmp.eq.s32.totalorder %s21, 0
    %p177 = por %p175, %p176
    %p178 = scmp.ne.s32.totalorder %s170, %s172
    %p179 = scmp.eq.s32.totalorder %s26, 1
    %p180 = por %p178, %p179
    %p181 = scmp.ne.s32.totalorder %s172, %s173
    %p182 = scmp.eq.s32.totalorder %s26, 0
    %p183 = por %p181, %p182
    %p184 = scmp.ne.s32.totalorder %s172, %s173
    %p185 = scmp.eq.s32.totalorder %s27, 1
    %p186 = por %p184, %p185
    %p188 = scmp.ne.s32.totalorder %s173, %s187
    %p189 = scmp.eq.s32.totalorder %s27, 0
    %p190 = por %p188, %p189
    %s192 = sadd.s32 %s191, 1
    %p195 = scmp.eq.s32.totalorder %s21, 1
    %p196 = scmp.ne.s32.totalorder %s191, %s193
    %p197 = scmp.eq.s32.totalorder %s21, 0
    %p198 = por %p196, %p197
    %p199 = scmp.ne.s32.totalorder %s191, %s193
    %p200 = scmp.eq.s32.totalorder %s26, 1
    %p201 = por %p199, %p200
    %p202 = scmp.ne.s32.totalorder %s193, %s194
    %p203 = scmp.eq.s32.totalorder %s26, 0
    %p204 = por %p202, %p203
    %p205 = scmp.ne.s32.totalorder %s193, %s194
    %p206 = scmp.eq.s32.totalorder %s27, 1
    %p207 = por %p205, %p206
    %p209 = scmp.ne.s32.totalorder %s194, %s208
    %p210 = scmp.eq.s32.totalorder %s27, 0
    %p211 = por %p209, %p210
    %s213 = sadd.s32 %s212, 1
    %p216 = scmp.eq.s32.totalorder %s21, 1
    %p217 = scmp.ne.s32.totalorder %s212, %s214
    %p218 = scmp.eq.s32.totalorder %s21, 0
    %p219 = por %p217, %p218
    %p220 = scmp.ne.s32.totalorder %s212, %s214
    %p221 = scmp.eq.s32.totalorder %s26, 1
    %p222 = por %p220, %p221
    %p223 = scmp.ne.s32.totalorder %s214, %s215
    %p224 = scmp.eq.s32.totalorder %s26, 0
    %p225 = por %p223, %p224
    %p226 = scmp.ne.s32.totalorder %s214, %s215
    %p227 = scmp.eq.s32.totalorder %s27, 1
    %p228 = por %p226, %p227
    %p230 = scmp.ne.s32.totalorder %s215, %s229
    %p231 = scmp.eq.s32.totalorder %s27, 0
    %p232 = por %p230, %p231
    %s234 = sadd.s32 %s233, 1
    %p237 = scmp.eq.s32.totalorder %s21, 1
    %p238 = scmp.ne.s32.totalorder %s233, %s235
    %p239 = scmp.eq.s32.totalorder %s21, 0
    %p240 = por %p238, %p239
    %p241 = scmp.ne.s32.totalorder %s233, %s235
    %p242 = scmp.eq.s32.totalorder %s26, 1
    %p243 = por %p241, %p242
    %p244 = scmp.ne.s32.totalorder %s235, %s236
    %p245 = scmp.eq.s32.totalorder %s26, 0
    %p246 = por %p244, %p245
    %p247 = scmp.ne.s32.totalorder %s235, %s236
    %p248 = scmp.eq.s32.totalorder %s27, 1
    %p249 = por %p247, %p248
    %p251 = scmp.ne.s32.totalorder %s236, %s250
    %p252 = scmp.eq.s32.totalorder %s27, 0
    %p253 = por %p251, %p252
    %s255 = sadd.s32 %s254, 1
    %p258 = scmp.eq.s32.totalorder %s21, 1
    %p259 = scmp.ne.s32.totalorder %s254, %s256
    %p260 = scmp.eq.s32.totalorder %s21, 0
    %p261 = por %p259, %p260
    %p262 = scmp.ne.s32.totalorder %s254, %s256
    %p263 = scmp.eq.s32.totalorder %s26, 1
    %p264 = por %p262, %p263
    %p265 = scmp.ne.s32.totalorder %s256, %s257
    %p266 = scmp.eq.s32.totalorder %s26, 0
    %p267 = por %p265, %p266
    %p268 = scmp.ne.s32.totalorder %s256, %s257
    %p269 = scmp.eq.s32.totalorder %s27, 1
    %p270 = por %p268, %p269
    %p272 = scmp.ne.s32.totalorder %s257, %s271
    %p273 = scmp.eq.s32.totalorder %s27, 0
    %p274 = por %p272, %p273
    %s276 = sadd.s32 %s275, 1
    %p279 = scmp.eq.s32.totalorder %s21, 1
    %p280 = scmp.ne.s32.totalorder %s275, %s277
    %p281 = scmp.eq.s32.totalorder %s21, 0
    %p282 = por %p280, %p281
    %p283 = scmp.ne.s32.totalorder %s275, %s277
    %p284 = scmp.eq.s32.totalorder %s26, 1
    %p285 = por %p283, %p284
    %p286 = scmp.ne.s32.totalorder %s277, %s278
    %p287 = scmp.eq.s32.totalorder %s26, 0
    %p288 = por %p286, %p287
    %p289 = scmp.ne.s32.totalorder %s277, %s278
    %p290 = scmp.eq.s32.totalorder %s27, 1
    %p291 = por %p289, %p290
    %p293 = scmp.ne.s32.totalorder %s278, %s292
    %p294 = scmp.eq.s32.totalorder %s27, 0
    %p295 = por %p293, %p294
    %s296 = ssub.s32 %s21, %s28
    %p297 = scmp.eq.s32.totalorder %s296, 0
    %s299 = sadd.s32 %s298, 1
    %s300 = scalar_select %p297, %s298, %s299
    %p303 = pneg %p297
    %p304 = scmp.eq.s32.totalorder %s21, 1
    %p305 = por %p303, %p304
    %p306 = scmp.ne.s32.totalorder %s298, %s301
    %p307 = scmp.eq.s32.totalorder %s21, 0
    %p308 = por %p306, %p307
    %p309 = scmp.ne.s32.totalorder %s298, %s301
    %p310 = scmp.eq.s32.totalorder %s26, 1
    %p311 = por %p309, %p310
    %p312 = scmp.ne.s32.totalorder %s301, %s302
    %p313 = scmp.eq.s32.totalorder %s26, 0
    %p314 = por %p312, %p313
    %p315 = scmp.ne.s32.totalorder %s301, %s302
    %p316 = scmp.eq.s32.totalorder %s27, 1
    %p317 = por %p315, %p316
    %p319 = scmp.ne.s32.totalorder %s302, %s318
    %p320 = scmp.eq.s32.totalorder %s27, 0
    %p321 = por %p319, %p320
    %s322 = ssub.s32 %s21, %s28
    %p323 = scmp.eq.s32.totalorder %s322, 0
    %s325 = sadd.s32 %s324, 1
    %s326 = scalar_select %p323, %s324, %s325
    %p329 = pneg %p323
    %p330 = scmp.eq.s32.totalorder %s21, 1
    %p331 = por %p329, %p330
    %p332 = scmp.ne.s32.totalorder %s324, %s327
    %p333 = scmp.eq.s32.totalorder %s21, 0
    %p334 = por %p332, %p333
    %p335 = scmp.ne.s32.totalorder %s324, %s327
    %p336 = scmp.eq.s32.totalorder %s26, 1
    %p337 = por %p335, %p336
    %p338 = scmp.ne.s32.totalorder %s327, %s328
    %p339 = scmp.eq.s32.totalorder %s26, 0
    %p340 = por %p338, %p339
    %p341 = scmp.ne.s32.totalorder %s327, %s328
    %p342 = scmp.eq.s32.totalorder %s27, 1
    %p343 = por %p341, %p342
    %p345 = scmp.ne.s32.totalorder %s328, %s344
    %p346 = scmp.eq.s32.totalorder %s27, 0
    %p347 = por %p345, %p346
    %s348 = ssub.s32 %s21, %s28
    %p349 = scmp.eq.s32.totalorder %s348, 0
    %s351 = sadd.s32 %s350, 1
    %s352 = scalar_select %p349, %s350, %s351
    %p355 = pneg %p349
    %p356 = scmp.eq.s32.totalorder %s21, 1
    %p357 = por %p355, %p356
    %p358 = scmp.ne.s32.totalorder %s350, %s353
    %p359 = scmp.eq.s32.totalorder %s21, 0
    %p360 = por %p358, %p359
    %p361 = scmp.ne.s32.totalorder %s350, %s353
    %p362 = scmp.eq.s32.totalorder %s26, 1
    %p363 = por %p361, %p362
    %p364 = scmp.ne.s32.totalorder %s353, %s354
    %p365 = scmp.eq.s32.totalorder %s26, 0
    %p366 = por %p364, %p365
    %p367 = scmp.ne.s32.totalorder %s353, %s354
    %p368 = scmp.eq.s32.totalorder %s27, 1
    %p369 = por %p367, %p368
    %p371 = scmp.ne.s32.totalorder %s354, %s370
    %p372 = scmp.eq.s32.totalorder %s27, 0
    %p373 = por %p371, %p372
    %p374 = scmp.le.s32.totalorder 1, %s21
    %p375 = scmp.lt.s32.totalorder %s21, 3
    %p376 = pnand %p374, %p375
    %p377 = pneg %p376
    // Predicated region
    $region9: #{octave_cr_forward.1} parent=5 // pred_check
      _
    $region10: #{octave_cr_forward.1} parent=5 // pred_check_branch
      %379 = sbr.rel (%p376) target = $region12
    $region11: #{octave_cr_forward.1} parent=5 // pred_region
      %s380 = ssub.s32 %s21, 1
      // Predicated region
      $region13: #{octave_cr_forward.1} parent=11 // pred_check
        %p381 = pneg %p120
      $region14: #{octave_cr_forward.1} parent=11 // pred_check_branch
        %383 = sbr.rel (%p381) target = $region16
      $region15: #{octave_cr_forward.1} parent=11 // pred_region
        _
      $region16: #{octave_cr_forward.1} parent=11 // pred_fallthru
        _
      // Predicated region
      $region17: #{octave_cr_forward.1} parent=11 // pred_check
        %p384 = pneg %p141
      $region18: #{octave_cr_forward.1} parent=11 // pred_check_branch
        %386 = sbr.rel (%p384) target = $region20
      $region19: #{octave_cr_forward.1} parent=11 // pred_region
        _
      $region20: #{octave_cr_forward.1} parent=11 // pred_fallthru
        _
      // Predicated region
      $region21: #{octave_cr_forward.1} parent=11 // pred_check
        %p387 = pneg %p162
      $region22: #{octave_cr_forward.1} parent=11 // pred_check_branch
        %389 = sbr.rel (%p387) target = $region24
      $region23: #{octave_cr_forward.1} parent=11 // pred_region
        _
      $region24: #{octave_cr_forward.1} parent=11 // pred_fallthru
        _
      // Predicated region
      $region25: #{octave_cr_forward.1} parent=11 // pred_check
        %p390 = pneg %p183
      $region26: #{octave_cr_forward.1} parent=11 // pred_check_branch
        %392 = sbr.rel (%p390) target = $region28
      $region27: #{octave_cr_forward.1} parent=11 // pred_region
        _
      $region28: #{octave_cr_forward.1} parent=11 // pred_fallthru
        _
      // Predicated region
      $region29: #{octave_cr_forward.1} parent=11 // pred_check
        %p393 = pneg %p204
      $region30: #{octave_cr_forward.1} parent=11 // pred_check_branch
        %395 = sbr.rel (%p393) target = $region32
      $region31: #{octave_cr_forward.1} parent=11 // pred_region
        _
      $region32: #{octave_cr_forward.1} parent=11 // pred_fallthru
        _
      // Predicated region
      $region33: #{octave_cr_forward.1} parent=11 // pred_check
        %p396 = pneg %p225
      $region34: #{octave_cr_forward.1} parent=11 // pred_check_branch
        %398 = sbr.rel (%p396) target = $region36
      $region35: #{octave_cr_forward.1} parent=11 // pred_region
        _
      $region36: #{octave_cr_forward.1} parent=11 // pred_fallthru
        _
      // Predicated region
      $region37: #{octave_cr_forward.1} parent=11 // pred_check
        %p399 = pneg %p246
      $region38: #{octave_cr_forward.1} parent=11 // pred_check_branch
        %401 = sbr.rel (%p399) target = $region40
      $region39: #{octave_cr_forward.1} parent=11 // pred_region
        _
      $region40: #{octave_cr_forward.1} parent=11 // pred_fallthru
        _
      // Predicated region
      $region41: #{octave_cr_forward.1} parent=11 // pred_check
        %p402 = pneg %p267
      $region42: #{octave_cr_forward.1} parent=11 // pred_check_branch
        %404 = sbr.rel (%p402) target = $region44
      $region43: #{octave_cr_forward.1} parent=11 // pred_region
        _
      $region44: #{octave_cr_forward.1} parent=11 // pred_fallthru
        _
      // Predicated region
      $region45: #{octave_cr_forward.1} parent=11 // pred_check
        %p405 = pneg %p288
      $region46: #{octave_cr_forward.1} parent=11 // pred_check_branch
        %407 = sbr.rel (%p405) target = $region48
      $region47: #{octave_cr_forward.1} parent=11 // pred_region
        _
      $region48: #{octave_cr_forward.1} parent=11 // pred_fallthru
        _
    $region12: #{octave_cr_forward.1} parent=5 // pred_fallthru
      _
    %p408 = scmp.lt.s32.totalorder %s21, 2
    // Predicated region
    $region49: #{octave_cr_forward.1} parent=5 // pred_check
      %p409 = pneg %p408
    $region50: #{octave_cr_forward.1} parent=5 // pred_check_branch
      %411 = sbr.rel (%p409) target = $region52
    $region51: #{octave_cr_forward.1} parent=5 // pred_region
      // Predicated region
      $region53: #{octave_cr_forward.1} parent=51 // pred_check
        %p412 = pneg %p41
      $region54: #{octave_cr_forward.1} parent=51 // pred_check_branch
        %414 = sbr.rel (%p412) target = $region56
      $region55: #{octave_cr_forward.1} parent=51 // pred_region
        %p415 = scmp.lt.s32.totalorder %s21, 1
        %s416 = scalar_select %p415, %s21, 1
        %s417 = smul.addr %s416, 6
        %s418 = smul.addr %s417, 8
        %s419 = scalar_lea.vmem %s0, %s418
      $region56: #{octave_cr_forward.1} parent=51 // pred_fallthru
        _
      // Predicated region
      $region57: #{octave_cr_forward.1} parent=51 // pred_check
        %p420 = pneg %p67
      $region58: #{octave_cr_forward.1} parent=51 // pred_check_branch
        %422 = sbr.rel (%p420) target = $region60
      $region59: #{octave_cr_forward.1} parent=51 // pred_region
        %p423 = scmp.lt.s32.totalorder %s21, 1
        %s424 = scalar_select %p423, %s21, 1
        %s425 = smul.addr %s424, 2
        %s426 = smul.addr %s425, 8
        %s427 = scalar_lea.vmem %s1, %s426
      $region60: #{octave_cr_forward.1} parent=51 // pred_fallthru
        _
      // Predicated region
      $region61: #{octave_cr_forward.1} parent=51 // pred_check
        %p428 = pneg %p93
      $region62: #{octave_cr_forward.1} parent=51 // pred_check_branch
        %430 = sbr.rel (%p428) target = $region64
      $region63: #{octave_cr_forward.1} parent=51 // pred_region
        %p431 = scmp.lt.s32.totalorder %s21, 1
        %s432 = scalar_select %p431, %s21, 1
        %s433 = smul.addr %s432, 8
        %s434 = scalar_lea.vmem %s2, %s433
      $region64: #{octave_cr_forward.1} parent=51 // pred_fallthru
        _
    $region52: #{octave_cr_forward.1} parent=5 // pred_fallthru
      _
    %p435 = scmp.le.s32.totalorder 1, %s21
    %p436 = scmp.lt.s32.totalorder %s21, 3
    %p437 = pnand %p435, %p436
    %p438 = pneg %p437
    // Predicated region
    $region65: #{octave_cr_forward.1} parent=5 // pred_check
      _
    $region66: #{octave_cr_forward.1} parent=5 // pred_check_branch
      %440 = sbr.rel (%p437) target = $region68
    $region67: #{octave_cr_forward.1} parent=5 // pred_region
      %s441 = ssub.s32 %s21, 1
      %p442 = scmp.lt.s32.totalorder %s26, 1
      %s443 = scalar_select %p442, %s26, 1
      %s444 = smul.addr %s443, 6
      %s445 = smul.addr %s444, 8
      %s446 = scalar_lea.vmem %s0, %s445
      %p447 = pneg %p47
      %p448 = pneg %p44
      %p449 = scmp.lt.s32.totalorder %s26, 1
      %s450 = scalar_select %p449, %s26, 1
      %s451 = smul.addr %s450, 2
      %s452 = smul.addr %s451, 8
      %s453 = scalar_lea.vmem %s1, %s452
      %p454 = pneg %p73
      %p455 = pneg %p70
      %p456 = scmp.lt.s32.totalorder %s26, 1
      %s457 = scalar_select %p456, %s26, 1
      %s458 = smul.addr %s457, 8
      %s459 = scalar_lea.vmem %s2, %s458
      %p460 = pneg %p99
      %p461 = pneg %p96
      %p462 = pneg %p120
      %p463 = pneg %p117
      %p464 = pneg %p141
      %p465 = pneg %p138
      %p466 = pneg %p162
      %p467 = pneg %p159
      %p468 = pneg %p183
      %p469 = pneg %p180
      %p470 = pneg %p204
      %p471 = pneg %p201
      %p472 = pneg %p225
      %p473 = pneg %p222
      %p474 = pneg %p246
      %p475 = pneg %p243
      %p476 = pneg %p267
      %p477 = pneg %p264
      %p478 = pneg %p288
      %p479 = pneg %p285
      %p480 = pneg %p314
      %p481 = pneg %p311
      %p482 = scmp.lt.s32.totalorder %s26, 1
      %s483 = scalar_select %p482, %s26, 1
      %s484 = smul.addr %s483, 5
      %s485 = smul.addr %s484, 8
      %s486 = scalar_lea.vmem %s12, %s485
      %p487 = pneg %p340
      %p488 = pneg %p337
      %p489 = scmp.lt.s32.totalorder %s26, 1
      %s490 = scalar_select %p489, %s26, 1
      %s491 = smul.addr %s490, 2
      %s492 = smul.addr %s491, 8
      %s493 = scalar_lea.vmem %s13, %s492
      %p494 = pneg %p366
      %p495 = pneg %p363
      %p496 = scmp.lt.s32.totalorder %s26, 1
      %s497 = scalar_select %p496, %s26, 1
      %s498 = smul.addr %s497, 8
      %s499 = scalar_lea.vmem %s14, %s498
      %p500 = scmp.lt.s32.totalorder %s26, 1
      %s501 = scalar_select %p500, %s26, 1
      %s502 = smul.addr %s501, 6
      %s503 = smul.addr %s502, 8
      %s504 = scalar_lea.vmem %s0, %s503
      %p505 = scmp.lt.s32.totalorder %s26, 1
      %s506 = scalar_select %p505, %s26, 1
      %s507 = smul.addr %s506, 2
      %s508 = smul.addr %s507, 8
      %s509 = scalar_lea.vmem %s1, %s508
      %p510 = scmp.lt.s32.totalorder %s26, 1
      %s511 = scalar_select %p510, %s26, 1
      %s512 = smul.addr %s511, 8
      %s513 = scalar_lea.vmem %s2, %s512
      %p514 = scmp.lt.s32.totalorder %s26, 1
      %s515 = scalar_select %p514, %s26, 1
      %s516 = smul.addr %s515, 5
      %s517 = smul.addr %s516, 8
      %s518 = scalar_lea.vmem %s12, %s517
      %p519 = scmp.lt.s32.totalorder %s26, 1
      %s520 = scalar_select %p519, %s26, 1
      %s521 = smul.addr %s520, 2
      %s522 = smul.addr %s521, 8
      %s523 = scalar_lea.vmem %s13, %s522
      %p524 = scmp.lt.s32.totalorder %s26, 1
      %s525 = scalar_select %p524, %s26, 1
      %s526 = smul.addr %s525, 8
      %s527 = scalar_lea.vmem %s14, %s526
      %v528 = vld [vmem:[%s504] sm:$0xff]
      %v529 = vld [vmem:[%s504 + $0x8] sm:$0xff]
      %v530 = vld [vmem:[%s504 + $0x10] sm:$0xff]
      %v531 = vld [vmem:[%s504 + $0x18] sm:$0xff]
      %v532 = vld [vmem:[%s504 + $0x20] sm:$0xff]
      %v533 = vld [vmem:[%s504 + $0x28] sm:$0xff]
      %v534 = vld [vmem:[%s509] sm:$0xff]
      %v535 = vld [vmem:[%s509 + $0x8] sm:$0xff]
      %v536 = vld [vmem:[%s513] sm:$0xff]
      %v537 = vld [vmem:[%s8] sm:$0xff]
      %v538 = vld [vmem:[%s8 + $0x8] sm:$0xff]
      %v539 = vld [vmem:[%s8 + $0x10] sm:$0xff]
      %v540 = vld [vmem:[%s8 + $0x18] sm:$0xff]
      %v541 = vld [vmem:[%s8 + $0x20] sm:$0xff]
      %v542 = vld [vmem:[%s8 + $0x28] sm:$0xff]
      %v543 = vld [vmem:[%s8 + $0x30] sm:$0xff]
      %v544 = vld [vmem:[%s8 + $0x38] sm:$0xff]
      %v545 = vld [vmem:[%s8 + $0x40] sm:$0xff]
      %v546 = vld [vmem:[%s8 + $0x48] sm:$0xff]
      %v547 = vld [vmem:[%s8 + $0x50] sm:$0xff]
      %v548 = vld [vmem:[%s8 + $0x58] sm:$0xff]
      %v549 = vld [vmem:[%s8 + $0x60] sm:$0xff]
      %v550 = vld [vmem:[%s8 + $0x68] sm:$0xff]
      %v551 = vld [vmem:[%s8 + $0x70] sm:$0xff]
      %v552 = vld [vmem:[%s8 + $0x78] sm:$0xff]
      %v553 = vld [vmem:[%s8 + $0x80] sm:$0xff]
      %v554 = vld [vmem:[%s8 + $0x88] sm:$0xff]
      %v555 = vld [vmem:[%s8 + $0x90] sm:$0xff]
      %v556 = vld [vmem:[%s8 + $0x98] sm:$0xff]
      %v557 = vld [vmem:[%s8 + $0xa0] sm:$0xff]
      %v558 = vld [vmem:[%s8 + $0xa8] sm:$0xff]
      %v559 = vld [vmem:[%s8 + $0xb0] sm:$0xff]
      %v560 = vld [vmem:[%s8 + $0xb8] sm:$0xff]
      %v561 = vld [vmem:[%s8 + $0xc0] sm:$0xff]
      %v562 = vld [vmem:[%s8 + $0xc8] sm:$0xff]
      %v563 = vld [vmem:[%s8 + $0xd0] sm:$0xff]
      %v564 = vld [vmem:[%s8 + $0xd8] sm:$0xff]
      %v565 = vld [vmem:[%s8 + $0xe0] sm:$0xff]
      %v566 = vld [vmem:[%s8 + $0xe8] sm:$0xff]
      %v567 = vld [vmem:[%s8 + $0xf0] sm:$0xff]
      %v568 = vld [vmem:[%s8 + $0xf8] sm:$0xff]
      %v569 = vld [vmem:[%s8 + $0x100] sm:$0xff]
      %v570 = vld [vmem:[%s8 + $0x108] sm:$0xff]
      %v571 = vld [vmem:[%s8 + $0x110] sm:$0xff]
      %v572 = vld [vmem:[%s8 + $0x118] sm:$0xff]
      %v573 = vld [vmem:[%s8 + $0x120] sm:$0xff]
      %v574 = vld [vmem:[%s8 + $0x128] sm:$0xff]
      %v575 = vld [vmem:[%s8 + $0x130] sm:$0xff]
      %v576 = vld [vmem:[%s8 + $0x138] sm:$0xff]
      %v577 = vld [vmem:[%s8 + $0x140] sm:$0xff]
      %v578 = vld [vmem:[%s8 + $0x148] sm:$0xff]
      %v579 = vld [vmem:[%s8 + $0x150] sm:$0xff]
      %v580 = vld [vmem:[%s8 + $0x158] sm:$0xff]
      %v581 = vld [vmem:[%s8 + $0x160] sm:$0xff]
      %v582 = vld [vmem:[%s8 + $0x168] sm:$0xff]
      %v583 = vld [vmem:[%s8 + $0x170] sm:$0xff]
      %v584 = vld [vmem:[%s8 + $0x178] sm:$0xff]
      %v585 = vld [vmem:[%s8 + $0x180] sm:$0xff]
      %v586 = vld [vmem:[%s8 + $0x188] sm:$0xff]
      %v587 = vld [vmem:[%s8 + $0x190] sm:$0xff]
      %v588 = vld [vmem:[%s8 + $0x198] sm:$0xff]
      %v589 = vld [vmem:[%s8 + $0x1a0] sm:$0xff]
      %v590 = vld [vmem:[%s8 + $0x1a8] sm:$0xff]
      %v591 = vld [vmem:[%s8 + $0x1b0] sm:$0xff]
      %v592 = vld [vmem:[%s8 + $0x1b8] sm:$0xff]
      %v593 = vld [vmem:[%s8 + $0x1c0] sm:$0xff]
      %v594 = vld [vmem:[%s8 + $0x1c8] sm:$0xff]
      %v595 = vld [vmem:[%s8 + $0x1d0] sm:$0xff]
      %v596 = vld [vmem:[%s8 + $0x1d8] sm:$0xff]
      %v597 = vld [vmem:[%s8 + $0x1e0] sm:$0xff]
      %v598 = vld [vmem:[%s8 + $0x1e8] sm:$0xff]
      %v599 = vld [vmem:[%s8 + $0x1f0] sm:$0xff]
      %v600 = vld [vmem:[%s8 + $0x1f8] sm:$0xff]
      %v601 = vld [vmem:[%s8 + $0x200] sm:$0xff]
      %v602 = vld [vmem:[%s8 + $0x208] sm:$0xff]
      %v603 = vld [vmem:[%s8 + $0x210] sm:$0xff]
      %v604 = vld [vmem:[%s8 + $0x218] sm:$0xff]
      %v605 = vld [vmem:[%s8 + $0x220] sm:$0xff]
      %v606 = vld [vmem:[%s8 + $0x228] sm:$0xff]
      %v607 = vld [vmem:[%s8 + $0x230] sm:$0xff]
      %v608 = vld [vmem:[%s8 + $0x238] sm:$0xff]
      %v609 = vld [vmem:[%s8 + $0x240] sm:$0xff]
      %v610 = vld [vmem:[%s8 + $0x248] sm:$0xff]
      %v611 = vld [vmem:[%s8 + $0x250] sm:$0xff]
      %v612 = vld [vmem:[%s8 + $0x258] sm:$0xff]
      %v613 = vld [vmem:[%s8 + $0x260] sm:$0xff]
      %v614 = vld [vmem:[%s8 + $0x268] sm:$0xff]
      %v615 = vld [vmem:[%s8 + $0x270] sm:$0xff]
      %v616 = vld [vmem:[%s8 + $0x278] sm:$0xff]
      %v617 = vld [vmem:[%s8 + $0x280] sm:$0xff]
      %v618 = vld [vmem:[%s8 + $0x288] sm:$0xff]
      %v619 = vld [vmem:[%s8 + $0x290] sm:$0xff]
      %v620 = vld [vmem:[%s8 + $0x298] sm:$0xff]
      %v621 = vld [vmem:[%s8 + $0x2a0] sm:$0xff]
      %v622 = vld [vmem:[%s8 + $0x2a8] sm:$0xff]
      %v623 = vld [vmem:[%s8 + $0x2b0] sm:$0xff]
      %v624 = vld [vmem:[%s8 + $0x2b8] sm:$0xff]
      %v625 = vld [vmem:[%s8 + $0x2c0] sm:$0xff]
      %v626 = vld [vmem:[%s8 + $0x2c8] sm:$0xff]
      %v627 = vld [vmem:[%s8 + $0x2d0] sm:$0xff]
      %v628 = vld [vmem:[%s8 + $0x2d8] sm:$0xff]
      %v629 = vld [vmem:[%s8 + $0x2e0] sm:$0xff]
      %v630 = vld [vmem:[%s8 + $0x2e8] sm:$0xff]
      %v631 = vld [vmem:[%s8 + $0x2f0] sm:$0xff]
      %v632 = vld [vmem:[%s8 + $0x2f8] sm:$0xff]
      %v633 = vld [vmem:[%s8 + $0x300] sm:$0xff]
      %v634 = vld [vmem:[%s8 + $0x308] sm:$0xff]
      %v635 = vld [vmem:[%s8 + $0x310] sm:$0xff]
      %v636 = vld [vmem:[%s8 + $0x318] sm:$0xff]
      %v637 = vld [vmem:[%s8 + $0x320] sm:$0xff]
      %v638 = vld [vmem:[%s8 + $0x328] sm:$0xff]
      %v639 = vld [vmem:[%s8 + $0x330] sm:$0xff]
      %v640 = vld [vmem:[%s8 + $0x338] sm:$0xff]
      %v641 = vld [vmem:[%s8 + $0x340] sm:$0xff]
      %v642 = vld [vmem:[%s8 + $0x348] sm:$0xff]
      %v643 = vld [vmem:[%s8 + $0x350] sm:$0xff]
      %v644 = vld [vmem:[%s8 + $0x358] sm:$0xff]
      %v645 = vld [vmem:[%s8 + $0x360] sm:$0xff]
      %v646 = vld [vmem:[%s8 + $0x368] sm:$0xff]
      %v647 = vld [vmem:[%s8 + $0x370] sm:$0xff]
      %v648 = vld [vmem:[%s8 + $0x378] sm:$0xff]
      %v649 = vld [vmem:[%s8 + $0x380] sm:$0xff]
      %v650 = vld [vmem:[%s8 + $0x388] sm:$0xff]
      %v651 = vld [vmem:[%s8 + $0x390] sm:$0xff]
      %v652 = vld [vmem:[%s8 + $0x398] sm:$0xff]
      %v653 = vld [vmem:[%s8 + $0x3a0] sm:$0xff]
      %v654 = vld [vmem:[%s8 + $0x3a8] sm:$0xff]
      %v655 = vld [vmem:[%s8 + $0x3b0] sm:$0xff]
      %v656 = vld [vmem:[%s8 + $0x3b8] sm:$0xff]
      %v657 = vld [vmem:[%s8 + $0x3c0] sm:$0xff]
      %v658 = vld [vmem:[%s8 + $0x3c8] sm:$0xff]
      %v659 = vld [vmem:[%s8 + $0x3d0] sm:$0xff]
      %v660 = vld [vmem:[%s8 + $0x3d8] sm:$0xff]
      %v661 = vld [vmem:[%s8 + $0x3e0] sm:$0xff]
      %v662 = vld [vmem:[%s8 + $0x3e8] sm:$0xff]
      %v663 = vld [vmem:[%s8 + $0x3f0] sm:$0xff]
      %v664 = vld [vmem:[%s8 + $0x3f8] sm:$0xff]
      %v665 = vld [vmem:[%s8 + $0x400] sm:$0xff]
      %v666 = vld [vmem:[%s8 + $0x408] sm:$0xff]
      %v667 = vld [vmem:[%s8 + $0x410] sm:$0xff]
      %v668 = vld [vmem:[%s8 + $0x418] sm:$0xff]
      %v669 = vld [vmem:[%s8 + $0x420] sm:$0xff]
      %v670 = vld [vmem:[%s8 + $0x428] sm:$0xff]
      %v671 = vld [vmem:[%s8 + $0x430] sm:$0xff]
      %v672 = vld [vmem:[%s8 + $0x438] sm:$0xff]
      %v673 = vld [vmem:[%s8 + $0x440] sm:$0xff]
      %v674 = vld [vmem:[%s8 + $0x448] sm:$0xff]
      %v675 = vld [vmem:[%s8 + $0x450] sm:$0xff]
      %v676 = vld [vmem:[%s8 + $0x458] sm:$0xff]
      %v677 = vld [vmem:[%s8 + $0x460] sm:$0xff]
      %v678 = vld [vmem:[%s8 + $0x468] sm:$0xff]
      %v679 = vld [vmem:[%s8 + $0x470] sm:$0xff]
      %v680 = vld [vmem:[%s8 + $0x478] sm:$0xff]
      %v681 = vld [vmem:[%s8 + $0x480] sm:$0xff]
      %v682 = vld [vmem:[%s8 + $0x488] sm:$0xff]
      %v683 = vld [vmem:[%s8 + $0x490] sm:$0xff]
      %v684 = vld [vmem:[%s8 + $0x498] sm:$0xff]
      %v685 = vld [vmem:[%s8 + $0x4a0] sm:$0xff]
      %v686 = vld [vmem:[%s8 + $0x4a8] sm:$0xff]
      %v687 = vld [vmem:[%s8 + $0x4b0] sm:$0xff]
      %v688 = vld [vmem:[%s8 + $0x4b8] sm:$0xff]
      %v689 = vld [vmem:[%s8 + $0x4c0] sm:$0xff]
      %v690 = vld [vmem:[%s8 + $0x4c8] sm:$0xff]
      %v691 = vld [vmem:[%s8 + $0x4d0] sm:$0xff]
      %v692 = vld [vmem:[%s8 + $0x4d8] sm:$0xff]
      %v693 = vld [vmem:[%s8 + $0x4e0] sm:$0xff]
      %v694 = vld [vmem:[%s8 + $0x4e8] sm:$0xff]
      %v695 = vld [vmem:[%s8 + $0x4f0] sm:$0xff]
      %v696 = vld [vmem:[%s8 + $0x4f8] sm:$0xff]
      %v697 = vld [vmem:[%s8 + $0x500] sm:$0xff]
      %v698 = vld [vmem:[%s8 + $0x508] sm:$0xff]
      %vm699 = vcmask 64512
      %v701 = vsel %vm699, %v533, 0
      %703 = vmatpush.msra.mxu0 %v567
      %704 = vmatpush.msra.mxu0 %v565
      %705 = vmatpush.msra.mxu0 %v563
      %706 = vmatpush.msra.mxu0 %v561
      %707 = vmatpush.msra.mxu0 %v559
      %708 = vmatpush.msra.mxu0 %v557
      %709 = vmatpush.msra.mxu0 %v555
      %710 = vmatpush.msra.mxu0 %v553
      %711 = vmatpush.msra.mxu0 %v551
      %712 = vmatpush.msra.mxu0 %v549
      %713 = vmatpush.msra.mxu0 %v547
      %714 = vmatpush.msra.mxu0 %v545
      %715 = vmatpush.msra.mxu0 %v543
      %716 = vmatpush.msra.mxu0 %v541
      %717 = vmatpush.msra.mxu0 %v539
      %718 = vmatpush.msra.mxu0 %v537
      %719 = vmatmul.f32.gmra.mxu0 %v528
      %v720 = vpop.f32.mrf.mxu0
      %v721 = vadd.f32 0.0, %v720
      %722 = vdwg.mxu0
      %723 = vmatpush.msra.mxu0 %v599
      %724 = vmatpush.msra.mxu0 %v597
      %725 = vmatpush.msra.mxu0 %v595
      %726 = vmatpush.msra.mxu0 %v593
      %727 = vmatpush.msra.mxu0 %v591
      %728 = vmatpush.msra.mxu0 %v589
      %729 = vmatpush.msra.mxu0 %v587
      %730 = vmatpush.msra.mxu0 %v585
      %731 = vmatpush.msra.mxu0 %v583
      %732 = vmatpush.msra.mxu0 %v581
      %733 = vmatpush.msra.mxu0 %v579
      %734 = vmatpush.msra.mxu0 %v577
      %735 = vmatpush.msra.mxu0 %v575
      %736 = vmatpush.msra.mxu0 %v573
      %737 = vmatpush.msra.mxu0 %v571
      %738 = vmatpush.msra.mxu0 %v569
      %739 = vmatmul.f32.gmra.mxu0 %v529
      %v740 = vpop.f32.mrf.mxu0
      %v741 = vadd.f32 %v721, %v740
      %742 = vdwg.mxu0
      %743 = vmatpush.msra.mxu0 %v631
      %744 = vmatpush.msra.mxu0 %v629
      %745 = vmatpush.msra.mxu0 %v627
      %746 = vmatpush.msra.mxu0 %v625
      %747 = vmatpush.msra.mxu0 %v623
      %748 = vmatpush.msra.mxu0 %v621
      %749 = vmatpush.msra.mxu0 %v619
      %750 = vmatpush.msra.mxu0 %v617
      %751 = vmatpush.msra.mxu0 %v615
      %752 = vmatpush.msra.mxu0 %v613
      %753 = vmatpush.msra.mxu0 %v611
      %754 = vmatpush.msra.mxu0 %v609
      %755 = vmatpush.msra.mxu0 %v607
      %756 = vmatpush.msra.mxu0 %v605
      %757 = vmatpush.msra.mxu0 %v603
      %758 = vmatpush.msra.mxu0 %v601
      %759 = vmatmul.f32.gmra.mxu0 %v530
      %v760 = vpop.f32.mrf.mxu0
      %v761 = vadd.f32 %v741, %v760
      %762 = vdwg.mxu0
      %763 = vmatpush.msra.mxu0 %v663
      %764 = vmatpush.msra.mxu0 %v661
      %765 = vmatpush.msra.mxu0 %v659
      %766 = vmatpush.msra.mxu0 %v657
      %767 = vmatpush.msra.mxu0 %v655
      %768 = vmatpush.msra.mxu0 %v653
      %769 = vmatpush.msra.mxu0 %v651
      %770 = vmatpush.msra.mxu0 %v649
      %771 = vmatpush.msra.mxu0 %v647
      %772 = vmatpush.msra.mxu0 %v645
      %773 = vmatpush.msra.mxu0 %v643
      %774 = vmatpush.msra.mxu0 %v641
      %775 = vmatpush.msra.mxu0 %v639
      %776 = vmatpush.msra.mxu0 %v637
      %777 = vmatpush.msra.mxu0 %v635
      %778 = vmatpush.msra.mxu0 %v633
      %779 = vmatmul.f32.gmra.mxu0 %v531
      %v780 = vpop.f32.mrf.mxu0
      %v781 = vadd.f32 %v761, %v780
      %782 = vdwg.mxu0
      %783 = vmatpush.msra.mxu0 %v695
      %784 = vmatpush.msra.mxu0 %v693
      %785 = vmatpush.msra.mxu0 %v691
      %786 = vmatpush.msra.mxu0 %v689
      %787 = vmatpush.msra.mxu0 %v687
      %788 = vmatpush.msra.mxu0 %v685
      %789 = vmatpush.msra.mxu0 %v683
      %790 = vmatpush.msra.mxu0 %v681
      %791 = vmatpush.msra.mxu0 %v679
      %792 = vmatpush.msra.mxu0 %v677
      %793 = vmatpush.msra.mxu0 %v675
      %794 = vmatpush.msra.mxu0 %v673
      %795 = vmatpush.msra.mxu0 %v671
      %796 = vmatpush.msra.mxu0 %v669
      %797 = vmatpush.msra.mxu0 %v667
      %798 = vmatpush.msra.mxu0 %v665
      %799 = vmatmul.f32.gmra.mxu0 %v532
      %v800 = vpop.f32.mrf.mxu0
      %v801 = vadd.f32 %v781, %v800
      %802 = vdwg.mxu0
      %803 = vmatpush.msra.mxu0 0.0
      %804 = vmatpush.msra.mxu0 0.0
      %805 = vmatpush.msra.mxu0 0.0
      %806 = vmatpush.msra.mxu0 0.0
      %807 = vmatpush.msra.mxu0 0.0
      %808 = vmatpush.msra.mxu0 0.0
      %809 = vmatpush.msra.mxu0 0.0
      %810 = vmatpush.msra.mxu0 0.0
      %811 = vmatpush.msra.mxu0 0.0
      %812 = vmatpush.msra.mxu0 0.0
      %813 = vmatpush.msra.mxu0 0.0
      %814 = vmatpush.msra.mxu0 0.0
      %815 = vmatpush.msra.mxu0 0.0
      %816 = vmatpush.msra.mxu0 0.0
      %817 = vmatpush.msra.mxu0 0.0
      %818 = vmatpush.msra.mxu0 %v697
      %819 = vmatmul.f32.gmra.mxu0 %v701
      %v820 = vpop.f32.mrf.mxu0
      %v821 = vadd.f32 %v801, %v820
      %822 = vdwg.mxu0
      %823 = vmatpush.msra.mxu0 %v568
      %824 = vmatpush.msra.mxu0 %v566
      %825 = vmatpush.msra.mxu0 %v564
      %826 = vmatpush.msra.mxu0 %v562
      %827 = vmatpush.msra.mxu0 %v560
      %828 = vmatpush.msra.mxu0 %v558
      %829 = vmatpush.msra.mxu0 %v556
      %830 = vmatpush.msra.mxu0 %v554
      %831 = vmatpush.msra.mxu0 %v552
      %832 = vmatpush.msra.mxu0 %v550
      %833 = vmatpush.msra.mxu0 %v548
      %834 = vmatpush.msra.mxu0 %v546
      %835 = vmatpush.msra.mxu0 %v544
      %836 = vmatpush.msra.mxu0 %v542
      %837 = vmatpush.msra.mxu0 %v540
      %838 = vmatpush.msra.mxu0 %v538
      %839 = vmatmul.f32.gmra.mxu0 %v528
      %v840 = vpop.f32.mrf.mxu0
      %v841 = vadd.f32 0.0, %v840
      %842 = vdwg.mxu0
      %843 = vmatpush.msra.mxu0 %v600
      %844 = vmatpush.msra.mxu0 %v598
      %845 = vmatpush.msra.mxu0 %v596
      %846 = vmatpush.msra.mxu0 %v594
      %847 = vmatpush.msra.mxu0 %v592
      %848 = vmatpush.msra.mxu0 %v590
      %849 = vmatpush.msra.mxu0 %v588
      %850 = vmatpush.msra.mxu0 %v586
      %851 = vmatpush.msra.mxu0 %v584
      %852 = vmatpush.msra.mxu0 %v582
      %853 = vmatpush.msra.mxu0 %v580
      %854 = vmatpush.msra.mxu0 %v578
      %855 = vmatpush.msra.mxu0 %v576
      %856 = vmatpush.msra.mxu0 %v574
      %857 = vmatpush.msra.mxu0 %v572
      %858 = vmatpush.msra.mxu0 %v570
      %859 = vmatmul.f32.gmra.mxu0 %v529
      %v860 = vpop.f32.mrf.mxu0
      %v861 = vadd.f32 %v841, %v860
      %862 = vdwg.mxu0
      %863 = vmatpush.msra.mxu0 %v632
      %864 = vmatpush.msra.mxu0 %v630
      %865 = vmatpush.msra.mxu0 %v628
      %866 = vmatpush.msra.mxu0 %v626
      %867 = vmatpush.msra.mxu0 %v624
      %868 = vmatpush.msra.mxu0 %v622
      %869 = vmatpush.msra.mxu0 %v620
      %870 = vmatpush.msra.mxu0 %v618
      %871 = vmatpush.msra.mxu0 %v616
      %872 = vmatpush.msra.mxu0 %v614
      %873 = vmatpush.msra.mxu0 %v612
      %874 = vmatpush.msra.mxu0 %v610
      %875 = vmatpush.msra.mxu0 %v608
      %876 = vmatpush.msra.mxu0 %v606
      %877 = vmatpush.msra.mxu0 %v604
      %878 = vmatpush.msra.mxu0 %v602
      %879 = vmatmul.f32.gmra.mxu0 %v530
      %v880 = vpop.f32.mrf.mxu0
      %v881 = vadd.f32 %v861, %v880
      %882 = vdwg.mxu0
      %883 = vmatpush.msra.mxu0 %v664
      %884 = vmatpush.msra.mxu0 %v662
      %885 = vmatpush.msra.mxu0 %v660
      %886 = vmatpush.msra.mxu0 %v658
      %887 = vmatpush.msra.mxu0 %v656
      %888 = vmatpush.msra.mxu0 %v654
      %889 = vmatpush.msra.mxu0 %v652
      %890 = vmatpush.msra.mxu0 %v650
      %891 = vmatpush.msra.mxu0 %v648
      %892 = vmatpush.msra.mxu0 %v646
      %893 = vmatpush.msra.mxu0 %v644
      %894 = vmatpush.msra.mxu0 %v642
      %895 = vmatpush.msra.mxu0 %v640
      %896 = vmatpush.msra.mxu0 %v638
      %897 = vmatpush.msra.mxu0 %v636
      %898 = vmatpush.msra.mxu0 %v634
      %899 = vmatmul.f32.gmra.mxu0 %v531
      %v900 = vpop.f32.mrf.mxu0
      %v901 = vadd.f32 %v881, %v900
      %902 = vdwg.mxu0
      %903 = vmatpush.msra.mxu0 %v696
      %904 = vmatpush.msra.mxu0 %v694
      %905 = vmatpush.msra.mxu0 %v692
      %906 = vmatpush.msra.mxu0 %v690
      %907 = vmatpush.msra.mxu0 %v688
      %908 = vmatpush.msra.mxu0 %v686
      %909 = vmatpush.msra.mxu0 %v684
      %910 = vmatpush.msra.mxu0 %v682
      %911 = vmatpush.msra.mxu0 %v680
      %912 = vmatpush.msra.mxu0 %v678
      %913 = vmatpush.msra.mxu0 %v676
      %914 = vmatpush.msra.mxu0 %v674
      %915 = vmatpush.msra.mxu0 %v672
      %916 = vmatpush.msra.mxu0 %v670
      %917 = vmatpush.msra.mxu0 %v668
      %918 = vmatpush.msra.mxu0 %v666
      %919 = vmatmul.f32.gmra.mxu0 %v532
      %v920 = vpop.f32.mrf.mxu0
      %v921 = vadd.f32 %v901, %v920
      %922 = vdwg.mxu0
      %923 = vmatpush.msra.mxu0 0.0
      %924 = vmatpush.msra.mxu0 0.0
      %925 = vmatpush.msra.mxu0 0.0
      %926 = vmatpush.msra.mxu0 0.0
      %927 = vmatpush.msra.mxu0 0.0
      %928 = vmatpush.msra.mxu0 0.0
      %929 = vmatpush.msra.mxu0 0.0
      %930 = vmatpush.msra.mxu0 0.0
      %931 = vmatpush.msra.mxu0 0.0
      %932 = vmatpush.msra.mxu0 0.0
      %933 = vmatpush.msra.mxu0 0.0
      %934 = vmatpush.msra.mxu0 0.0
      %935 = vmatpush.msra.mxu0 0.0
      %936 = vmatpush.msra.mxu0 0.0
      %937 = vmatpush.msra.mxu0 0.0
      %938 = vmatpush.msra.mxu0 %v698
      %939 = vmatmul.f32.gmra.mxu0 %v701
      %v940 = vpop.f32.mrf.mxu0
      %v941 = vadd.f32 %v921, %v940
      %942 = vdwg.mxu0
      %v943 = vld [vmem:[%s9] sm:$0xff]
      %v944 = vld [vmem:[%s9 + $0x8] sm:$0xff]
      %v945 = vld [vmem:[%s9 + $0x10] sm:$0xff]
      %v946 = vld [vmem:[%s9 + $0x18] sm:$0xff]
      %v947 = vld [vmem:[%s9 + $0x20] sm:$0xff]
      %v948 = vld [vmem:[%s9 + $0x28] sm:$0xff]
      %v949 = vld [vmem:[%s9 + $0x30] sm:$0xff]
      %v950 = vld [vmem:[%s9 + $0x38] sm:$0xff]
      %v951 = vld [vmem:[%s9 + $0x40] sm:$0xff]
      %v952 = vld [vmem:[%s9 + $0x48] sm:$0xff]
      %v953 = vld [vmem:[%s9 + $0x50] sm:$0xff]
      %v954 = vld [vmem:[%s9 + $0x58] sm:$0xff]
      %v955 = vld [vmem:[%s9 + $0x60] sm:$0xff]
      %v956 = vld [vmem:[%s9 + $0x68] sm:$0xff]
      %v957 = vld [vmem:[%s9 + $0x70] sm:$0xff]
      %v958 = vld [vmem:[%s9 + $0x78] sm:$0xff]
      %v959 = vld [vmem:[%s9 + $0x80] sm:$0xff]
      %v960 = vld [vmem:[%s9 + $0x88] sm:$0xff]
      %v961 = vld [vmem:[%s9 + $0x90] sm:$0xff]
      %v962 = vld [vmem:[%s9 + $0x98] sm:$0xff]
      %v963 = vld [vmem:[%s9 + $0xa0] sm:$0xff]
      %v964 = vld [vmem:[%s9 + $0xa8] sm:$0xff]
      %v965 = vld [vmem:[%s9 + $0xb0] sm:$0xff]
      %v966 = vld [vmem:[%s9 + $0xb8] sm:$0xff]
      %v967 = vld [vmem:[%s9 + $0xc0] sm:$0xff]
      %vm968 = vcmask 588800
      %v970 = vsel %vm968, %v535, 0
      %972 = vmatpush.msra.mxu0 %v958
      %973 = vmatpush.msra.mxu0 %v957
      %974 = vmatpush.msra.mxu0 %v956
      %975 = vmatpush.msra.mxu0 %v955
      %976 = vmatpush.msra.mxu0 %v954
      %977 = vmatpush.msra.mxu0 %v953
      %978 = vmatpush.msra.mxu0 %v952
      %979 = vmatpush.msra.mxu0 %v951
      %980 = vmatpush.msra.mxu0 %v950
      %981 = vmatpush.msra.mxu0 %v949
      %982 = vmatpush.msra.mxu0 %v948
      %983 = vmatpush.msra.mxu0 %v947
      %984 = vmatpush.msra.mxu0 %v946
      %985 = vmatpush.msra.mxu0 %v945
      %986 = vmatpush.msra.mxu0 %v944
      %987 = vmatpush.msra.mxu0 %v943
      %988 = vmatmul.f32.gmra.mxu0 %v534
      %v989 = vpop.f32.mrf.mxu0
      %v990 = vadd.f32 0.0, %v989
      %991 = vdwg.mxu0
      %992 = vmatpush.msra.mxu0 0.0
      %993 = vmatpush.msra.mxu0 0.0
      %994 = vmatpush.msra.mxu0 0.0
      %995 = vmatpush.msra.mxu0 0.0
      %996 = vmatpush.msra.mxu0 0.0
      %997 = vmatpush.msra.mxu0 0.0
      %998 = vmatpush.msra.mxu0 0.0
      %999 = vmatpush.msra.mxu0 %v967
      %1000 = vmatpush.msra.mxu0 %v966
      %1001 = vmatpush.msra.mxu0 %v965
      %1002 = vmatpush.msra.mxu0 %v964
      %1003 = vmatpush.msra.mxu0 %v963
      %1004 = vmatpush.msra.mxu0 %v962
      %1005 = vmatpush.msra.mxu0 %v961
      %1006 = vmatpush.msra.mxu0 %v960
      %1007 = vmatpush.msra.mxu0 %v959
      %1008 = vmatmul.f32.gmra.mxu0 %v970
      %v1009 = vpop.f32.mrf.mxu0
      %v1010 = vadd.f32 %v990, %v1009
      %1011 = vdwg.mxu0
      %v1012 = vld [vmem:[%s3] sm:$0xff]
      %1018 = vrot.lane.b32.xlu0 %v528, 127
      %v1019 = vpop.permute.xlu0 %1018
      %1020 = vrot.lane.b32.xlu0 %v529, 127
      %v1021 = vpop.permute.xlu0 %1020
      %1022 = vrot.lane.b32.xlu0 %v530, 127
      %v1023 = vpop.permute.xlu0 %1022
      %1024 = vrot.lane.b32.xlu0 %v531, 127
      %v1025 = vpop.permute.xlu0 %1024
      %1026 = vrot.lane.b32.xlu0 %v532, 127
      %v1027 = vpop.permute.xlu0 %1026
      %vm1028 = vcmask 1039360
      %v1029 = vsel %vm1028, %v1019, %v1021
      %v1030 = vsel %vm1028, %v1021, %v1023
      %v1031 = vsel %vm1028, %v1023, %v1025
      %v1032 = vsel %vm1028, %v1025, %v1027
      %1038 = vrot.lane.b32.xlu0 %v528, 126
      %v1039 = vpop.permute.xlu0 %1038
      %1040 = vrot.lane.b32.xlu0 %v529, 126
      %v1041 = vpop.permute.xlu0 %1040
      %1042 = vrot.lane.b32.xlu0 %v530, 126
      %v1043 = vpop.permute.xlu0 %1042
      %1044 = vrot.lane.b32.xlu0 %v531, 126
      %v1045 = vpop.permute.xlu0 %1044
      %1046 = vrot.lane.b32.xlu0 %v532, 126
      %v1047 = vpop.permute.xlu0 %1046
      %vm1048 = vcmask 1031168
      %v1049 = vsel %vm1048, %v1039, %v1041
      %v1050 = vsel %vm1048, %v1041, %v1043
      %v1051 = vsel %vm1048, %v1043, %v1045
      %v1052 = vsel %vm1048, %v1045, %v1047
      %1058 = vrot.lane.b32.xlu0 %v528, 110
      %v1059 = vpop.permute.xlu0 %1058
      %1060 = vrot.lane.b32.xlu0 %v529, 110
      %v1061 = vpop.permute.xlu0 %1060
      %1062 = vrot.lane.b32.xlu0 %v530, 110
      %v1063 = vpop.permute.xlu0 %1062
      %1064 = vrot.lane.b32.xlu0 %v531, 110
      %v1065 = vpop.permute.xlu0 %1064
      %1066 = vrot.lane.b32.xlu0 %v532, 110
      %v1067 = vpop.permute.xlu0 %1066
      %vm1068 = vcmask 900096
      %v1069 = vsel %vm1068, %v1059, %v1061
      %v1070 = vsel %vm1068, %v1061, %v1063
      %v1071 = vsel %vm1068, %v1063, %v1065
      %v1072 = vsel %vm1068, %v1065, %v1067
      %1078 = vrot.lane.b32.xlu0 %v528, 109
      %v1079 = vpop.permute.xlu0 %1078
      %1080 = vrot.lane.b32.xlu0 %v529, 109
      %v1081 = vpop.permute.xlu0 %1080
      %1082 = vrot.lane.b32.xlu0 %v530, 109
      %v1083 = vpop.permute.xlu0 %1082
      %1084 = vrot.lane.b32.xlu0 %v531, 109
      %v1085 = vpop.permute.xlu0 %1084
      %1086 = vrot.lane.b32.xlu0 %v532, 109
      %v1087 = vpop.permute.xlu0 %1086
      %vm1088 = vcmask 891904
      %v1089 = vsel %vm1088, %v1079, %v1081
      %v1090 = vsel %vm1088, %v1081, %v1083
      %v1091 = vsel %vm1088, %v1083, %v1085
      %v1092 = vsel %vm1088, %v1085, %v1087
      %1098 = vrot.lane.b32.xlu0 %v528, 108
      %v1099 = vpop.permute.xlu0 %1098
      %1100 = vrot.lane.b32.xlu0 %v529, 108
      %v1101 = vpop.permute.xlu0 %1100
      %1102 = vrot.lane.b32.xlu0 %v530, 108
      %v1103 = vpop.permute.xlu0 %1102
      %1104 = vrot.lane.b32.xlu0 %v531, 108
      %v1105 = vpop.permute.xlu0 %1104
      %1106 = vrot.lane.b32.xlu0 %v532, 108
      %v1107 = vpop.permute.xlu0 %1106
      %vm1108 = vcmask 883712
      %v1109 = vsel %vm1108, %v1099, %v1101
      %v1110 = vsel %vm1108, %v1101, %v1103
      %v1111 = vsel %vm1108, %v1103, %v1105
      %v1112 = vsel %vm1108, %v1105, %v1107
      %1118 = vrot.lane.b32.xlu0 %v528, 92
      %v1119 = vpop.permute.xlu0 %1118
      %1120 = vrot.lane.b32.xlu0 %v529, 92
      %v1121 = vpop.permute.xlu0 %1120
      %1122 = vrot.lane.b32.xlu0 %v530, 92
      %v1123 = vpop.permute.xlu0 %1122
      %1124 = vrot.lane.b32.xlu0 %v531, 92
      %v1125 = vpop.permute.xlu0 %1124
      %1126 = vrot.lane.b32.xlu0 %v532, 92
      %v1127 = vpop.permute.xlu0 %1126
      %1128 = vrot.lane.b32.xlu0 %v533, 92
      %v1129 = vpop.permute.xlu0 %1128
      %vm1130 = vcmask 752640
      %v1131 = vsel %vm1130, %v1119, %v1121
      %v1132 = vsel %vm1130, %v1121, %v1123
      %v1133 = vsel %vm1130, %v1123, %v1125
      %v1134 = vsel %vm1130, %v1125, %v1127
      %v1135 = vsel %vm1130, %v1127, %v1129
      %1141 = vrot.lane.b32.xlu0 %v528, 91
      %v1142 = vpop.permute.xlu0 %1141
      %1143 = vrot.lane.b32.xlu0 %v529, 91
      %v1144 = vpop.permute.xlu0 %1143
      %1145 = vrot.lane.b32.xlu0 %v530, 91
      %v1146 = vpop.permute.xlu0 %1145
      %1147 = vrot.lane.b32.xlu0 %v531, 91
      %v1148 = vpop.permute.xlu0 %1147
      %1149 = vrot.lane.b32.xlu0 %v532, 91
      %v1150 = vpop.permute.xlu0 %1149
      %1151 = vrot.lane.b32.xlu0 %v533, 91
      %v1152 = vpop.permute.xlu0 %1151
      %vm1153 = vcmask 744448
      %v1154 = vsel %vm1153, %v1142, %v1144
      %v1155 = vsel %vm1153, %v1144, %v1146
      %v1156 = vsel %vm1153, %v1146, %v1148
      %v1157 = vsel %vm1153, %v1148, %v1150
      %v1158 = vsel %vm1153, %v1150, %v1152
      %1164 = vrot.lane.b32.xlu0 %v528, 90
      %v1165 = vpop.permute.xlu0 %1164
      %1166 = vrot.lane.b32.xlu0 %v529, 90
      %v1167 = vpop.permute.xlu0 %1166
      %1168 = vrot.lane.b32.xlu0 %v530, 90
      %v1169 = vpop.permute.xlu0 %1168
      %1170 = vrot.lane.b32.xlu0 %v531, 90
      %v1171 = vpop.permute.xlu0 %1170
      %1172 = vrot.lane.b32.xlu0 %v532, 90
      %v1173 = vpop.permute.xlu0 %1172
      %1174 = vrot.lane.b32.xlu0 %v533, 90
      %v1175 = vpop.permute.xlu0 %1174
      %vm1176 = vcmask 736256
      %v1177 = vsel %vm1176, %v1165, %v1167
      %v1178 = vsel %vm1176, %v1167, %v1169
      %v1179 = vsel %vm1176, %v1169, %v1171
      %v1180 = vsel %vm1176, %v1171, %v1173
      %v1181 = vsel %vm1176, %v1173, %v1175
      %v1187 = vld [vmem:[%s4] sm:$0xff]
      %v1188 = vld [vmem:[%s4 + $0x8] sm:$0xff]
      %1190 = vrot.lane.b32.xlu0 %v534, 127
      %v1191 = vpop.permute.xlu0 %1190
      %1192 = vrot.lane.b32.xlu0 %v535, 127
      %v1193 = vpop.permute.xlu0 %1192
      %v1194 = vsel %vm1028, %v1191, %v1193
      %1197 = vrot.lane.b32.xlu0 %v534, 126
      %v1198 = vpop.permute.xlu0 %1197
      %1199 = vrot.lane.b32.xlu0 %v535, 126
      %v1200 = vpop.permute.xlu0 %1199
      %v1201 = vsel %vm1048, %v1198, %v1200
      %1204 = vrot.lane.b32.xlu0 %v534, 118
      %v1205 = vpop.permute.xlu0 %1204
      %1206 = vrot.lane.b32.xlu0 %v535, 118
      %v1207 = vpop.permute.xlu0 %1206
      %vm1208 = vcmask 965632
      %v1209 = vsel %vm1208, %v1205, %v1207
      %1212 = vrot.lane.b32.xlu0 %v534, 117
      %v1213 = vpop.permute.xlu0 %1212
      %1214 = vrot.lane.b32.xlu0 %v535, 117
      %v1215 = vpop.permute.xlu0 %1214
      %vm1216 = vcmask 957440
      %v1217 = vsel %vm1216, %v1213, %v1215
      %1220 = vrot.lane.b32.xlu0 %v534, 116
      %v1221 = vpop.permute.xlu0 %1220
      %1222 = vrot.lane.b32.xlu0 %v535, 116
      %v1223 = vpop.permute.xlu0 %1222
      %vm1224 = vcmask 949248
      %v1225 = vsel %vm1224, %v1221, %v1223
      %1228 = vrot.lane.b32.xlu0 %v534, 108
      %v1229 = vpop.permute.xlu0 %1228
      %1230 = vrot.lane.b32.xlu0 %v535, 108
      %v1231 = vpop.permute.xlu0 %1230
      %v1232 = vsel %vm1108, %v1229, %v1231
      %1235 = vrot.lane.b32.xlu0 %v534, 107
      %v1236 = vpop.permute.xlu0 %1235
      %1237 = vrot.lane.b32.xlu0 %v535, 107
      %v1238 = vpop.permute.xlu0 %1237
      %vm1239 = vcmask 875520
      %v1240 = vsel %vm1239, %v1236, %v1238
      %1243 = vrot.lane.b32.xlu0 %v534, 106
      %v1244 = vpop.permute.xlu0 %1243
      %1245 = vrot.lane.b32.xlu0 %v535, 106
      %v1246 = vpop.permute.xlu0 %1245
      %vm1247 = vcmask 867328
      %v1248 = vsel %vm1247, %v1244, %v1246
      %v1252 = vsel %vm968, %v1187, 0
      %v1255 = vsel %vm968, %v1188, 0
      %1257 = vmatpush.msra.mxu0 0.0
      %1258 = vmatpush.msra.mxu0 0.0
      %1259 = vmatpush.msra.mxu0 0.0
      %1260 = vmatpush.msra.mxu0 0.0
      %1261 = vmatpush.msra.mxu0 0.0
      %1262 = vmatpush.msra.mxu0 0.0
      %1263 = vmatpush.msra.mxu0 0.0
      %1264 = vmatpush.msra.mxu0 %v1248
      %1265 = vmatpush.msra.mxu0 %v1240
      %1266 = vmatpush.msra.mxu0 %v1232
      %1267 = vmatpush.msra.mxu0 %v1225
      %1268 = vmatpush.msra.mxu0 %v1217
      %1269 = vmatpush.msra.mxu0 %v1209
      %1270 = vmatpush.msra.mxu0 %v1201
      %1271 = vmatpush.msra.mxu0 %v1194
      %1272 = vmatpush.msra.mxu0 %v534
      %1273 = vmatmul.f32.gmra.mxu0 %v1252
      %v1274 = vpop.f32.mrf.mxu0
      %v1275 = vadd.f32 0.0, %v1274
      %1276 = vmatmul.f32.gmra.mxu0 %v1255
      %v1277 = vpop.f32.mrf.mxu0
      %v1278 = vadd.f32 0.0, %v1277
      %1279 = vdwg.mxu0
      %1280 = vmatpush.msra.mxu0 0.0
      %1281 = vmatpush.msra.mxu0 0.0
      %1282 = vmatpush.msra.mxu0 0.0
      %1283 = vmatpush.msra.mxu0 0.0
      %1284 = vmatpush.msra.mxu0 0.0
      %1285 = vmatpush.msra.mxu0 0.0
      %1286 = vmatpush.msra.mxu0 0.0
      %1287 = vmatpush.msra.mxu0 %v1246
      %1288 = vmatpush.msra.mxu0 %v1238
      %1289 = vmatpush.msra.mxu0 %v1231
      %1290 = vmatpush.msra.mxu0 %v1223
      %1291 = vmatpush.msra.mxu0 %v1215
      %1292 = vmatpush.msra.mxu0 %v1207
      %1293 = vmatpush.msra.mxu0 %v1200
      %1294 = vmatpush.msra.mxu0 %v1193
      %1295 = vmatpush.msra.mxu0 %v535
      %1296 = vmatmul.f32.gmra.mxu0 %v1252
      %v1297 = vpop.f32.mrf.mxu0
      %v1298 = vadd.f32 0.0, %v1297
      %1299 = vmatmul.f32.gmra.mxu0 %v1255
      %v1300 = vpop.f32.mrf.mxu0
      %v1301 = vadd.f32 0.0, %v1300
      %1302 = vdwg.mxu0
      %v1303 = vld [vmem:[%s5] sm:$0xff]
      %v1304 = vld [vmem:[%s5 + $0x8] sm:$0xff]
      %1306 = vrot.lane.b32.xlu0 %v536, 127
      %v1307 = vpop.permute.xlu0 %1306
      %1309 = vrot.lane.b32.xlu0 %v536, 126
      %v1310 = vpop.permute.xlu0 %1309
      %1312 = vrot.lane.b32.xlu0 %v536, 122
      %v1313 = vpop.permute.xlu0 %1312
      %1315 = vrot.lane.b32.xlu0 %v536, 121
      %v1316 = vpop.permute.xlu0 %1315
      %1318 = vrot.lane.b32.xlu0 %v536, 120
      %v1319 = vpop.permute.xlu0 %1318
      %1321 = vrot.lane.b32.xlu0 %v536, 116
      %v1322 = vpop.permute.xlu0 %1321
      %1324 = vrot.lane.b32.xlu0 %v536, 115
      %v1325 = vpop.permute.xlu0 %1324
      %1327 = vrot.lane.b32.xlu0 %v536, 114
      %v1328 = vpop.permute.xlu0 %1327
      %v1331 = vsel %vm968, %v1303, 0
      %v1334 = vsel %vm968, %v1304, 0
      %1336 = vmatpush.msra.mxu0 0.0
      %1337 = vmatpush.msra.mxu0 0.0
      %1338 = vmatpush.msra.mxu0 0.0
      %1339 = vmatpush.msra.mxu0 0.0
      %1340 = vmatpush.msra.mxu0 0.0
      %1341 = vmatpush.msra.mxu0 0.0
      %1342 = vmatpush.msra.mxu0 0.0
      %1343 = vmatpush.msra.mxu0 %v1328
      %1344 = vmatpush.msra.mxu0 %v1325
      %1345 = vmatpush.msra.mxu0 %v1322
      %1346 = vmatpush.msra.mxu0 %v1319
      %1347 = vmatpush.msra.mxu0 %v1316
      %1348 = vmatpush.msra.mxu0 %v1313
      %1349 = vmatpush.msra.mxu0 %v1310
      %1350 = vmatpush.msra.mxu0 %v1307
      %1351 = vmatpush.msra.mxu0 %v536
      %1352 = vmatmul.f32.gmra.mxu0 %v1331
      %v1353 = vpop.f32.mrf.mxu0
      %v1354 = vadd.f32 0.0, %v1353
      %1355 = vmatmul.f32.gmra.mxu0 %v1334
      %v1356 = vpop.f32.mrf.mxu0
      %v1357 = vadd.f32 0.0, %v1356
      %1358 = vdwg.mxu0
      %v1359 = vld [vmem:[%s6] sm:$0xff]
      %1362 = vrot.lane.b32.xlu0 %v821, 127
      %v1363 = vpop.permute.xlu0 %1362
      %1364 = vrot.lane.b32.xlu0 %v941, 127
      %v1365 = vpop.permute.xlu0 %1364
      %v1366 = vsel %vm1028, %v1363, %v1365
      %1369 = vrot.lane.b32.xlu0 %v821, 126
      %v1370 = vpop.permute.xlu0 %1369
      %1371 = vrot.lane.b32.xlu0 %v941, 126
      %v1372 = vpop.permute.xlu0 %1371
      %v1373 = vsel %vm1048, %v1370, %v1372
      %1376 = vrot.lane.b32.xlu0 %v821, 118
      %v1377 = vpop.permute.xlu0 %1376
      %1378 = vrot.lane.b32.xlu0 %v941, 118
      %v1379 = vpop.permute.xlu0 %1378
      %v1380 = vsel %vm1208, %v1377, %v1379
      %1383 = vrot.lane.b32.xlu0 %v821, 117
      %v1384 = vpop.permute.xlu0 %1383
      %1385 = vrot.lane.b32.xlu0 %v941, 117
      %v1386 = vpop.permute.xlu0 %1385
      %v1387 = vsel %vm1216, %v1384, %v1386
      %1390 = vrot.lane.b32.xlu0 %v821, 116
      %v1391 = vpop.permute.xlu0 %1390
      %1392 = vrot.lane.b32.xlu0 %v941, 116
      %v1393 = vpop.permute.xlu0 %1392
      %v1394 = vsel %vm1224, %v1391, %v1393
      %1397 = vrot.lane.b32.xlu0 %v821, 108
      %v1398 = vpop.permute.xlu0 %1397
      %1399 = vrot.lane.b32.xlu0 %v941, 108
      %v1400 = vpop.permute.xlu0 %1399
      %v1401 = vsel %vm1108, %v1398, %v1400
      %1404 = vrot.lane.b32.xlu0 %v821, 107
      %v1405 = vpop.permute.xlu0 %1404
      %1406 = vrot.lane.b32.xlu0 %v941, 107
      %v1407 = vpop.permute.xlu0 %1406
      %v1408 = vsel %vm1239, %v1405, %v1407
      %1411 = vrot.lane.b32.xlu0 %v821, 106
      %v1412 = vpop.permute.xlu0 %1411
      %1413 = vrot.lane.b32.xlu0 %v941, 106
      %v1414 = vpop.permute.xlu0 %1413
      %v1415 = vsel %vm1247, %v1412, %v1414
      %v1419 = vsel %vm968, %v1359, 0
      %1421 = vmatpush.msra.mxu0 0.0
      %1422 = vmatpush.msra.mxu0 0.0
      %1423 = vmatpush.msra.mxu0 0.0
      %1424 = vmatpush.msra.mxu0 0.0
      %1425 = vmatpush.msra.mxu0 0.0
      %1426 = vmatpush.msra.mxu0 0.0
      %1427 = vmatpush.msra.mxu0 0.0
      %1428 = vmatpush.msra.mxu0 %v1415
      %1429 = vmatpush.msra.mxu0 %v1408
      %1430 = vmatpush.msra.mxu0 %v1401
      %1431 = vmatpush.msra.mxu0 %v1394
      %1432 = vmatpush.msra.mxu0 %v1387
      %1433 = vmatpush.msra.mxu0 %v1380
      %1434 = vmatpush.msra.mxu0 %v1373
      %1435 = vmatpush.msra.mxu0 %v1366
      %1436 = vmatpush.msra.mxu0 %v821
      %1437 = vmatmul.f32.gmra.mxu0 %v1419
      %v1438 = vpop.f32.mrf.mxu0
      %v1439 = vadd.f32 0.0, %v1438
      %1440 = vdwg.mxu0
      %1441 = vmatpush.msra.mxu0 0.0
      %1442 = vmatpush.msra.mxu0 0.0
      %1443 = vmatpush.msra.mxu0 0.0
      %1444 = vmatpush.msra.mxu0 0.0
      %1445 = vmatpush.msra.mxu0 0.0
      %1446 = vmatpush.msra.mxu0 0.0
      %1447 = vmatpush.msra.mxu0 0.0
      %1448 = vmatpush.msra.mxu0 %v1414
      %1449 = vmatpush.msra.mxu0 %v1407
      %1450 = vmatpush.msra.mxu0 %v1400
      %1451 = vmatpush.msra.mxu0 %v1393
      %1452 = vmatpush.msra.mxu0 %v1386
      %1453 = vmatpush.msra.mxu0 %v1379
      %1454 = vmatpush.msra.mxu0 %v1372
      %1455 = vmatpush.msra.mxu0 %v1365
      %1456 = vmatpush.msra.mxu0 %v941
      %1457 = vmatmul.f32.gmra.mxu0 %v1419
      %v1458 = vpop.f32.mrf.mxu0
      %v1459 = vadd.f32 0.0, %v1458
      %1460 = vdwg.mxu0
      %v1461 = vld [vmem:[%s7] sm:$0xff]
      %1463 = vrot.lane.b32.xlu0 %v1010, 127
      %v1464 = vpop.permute.xlu0 %1463
      %1466 = vrot.lane.b32.xlu0 %v1010, 126
      %v1467 = vpop.permute.xlu0 %1466
      %1469 = vrot.lane.b32.xlu0 %v1010, 122
      %v1470 = vpop.permute.xlu0 %1469
      %1472 = vrot.lane.b32.xlu0 %v1010, 121
      %v1473 = vpop.permute.xlu0 %1472
      %1475 = vrot.lane.b32.xlu0 %v1010, 120
      %v1476 = vpop.permute.xlu0 %1475
      %1478 = vrot.lane.b32.xlu0 %v1010, 116
      %v1479 = vpop.permute.xlu0 %1478
      %1481 = vrot.lane.b32.xlu0 %v1010, 115
      %v1482 = vpop.permute.xlu0 %1481
      %1484 = vrot.lane.b32.xlu0 %v1010, 114
      %v1485 = vpop.permute.xlu0 %1484
      %v1488 = vsel %vm968, %v1461, 0
      %1490 = vmatpush.msra.mxu0 0.0
      %1491 = vmatpush.msra.mxu0 0.0
      %1492 = vmatpush.msra.mxu0 0.0
      %1493 = vmatpush.msra.mxu0 0.0
      %1494 = vmatpush.msra.mxu0 0.0
      %1495 = vmatpush.msra.mxu0 0.0
      %1496 = vmatpush.msra.mxu0 0.0
      %1497 = vmatpush.msra.mxu0 %v1485
      %1498 = vmatpush.msra.mxu0 %v1482
      %1499 = vmatpush.msra.mxu0 %v1479
      %1500 = vmatpush.msra.mxu0 %v1476
      %1501 = vmatpush.msra.mxu0 %v1473
      %1502 = vmatpush.msra.mxu0 %v1470
      %1503 = vmatpush.msra.mxu0 %v1467
      %1504 = vmatpush.msra.mxu0 %v1464
      %1505 = vmatpush.msra.mxu0 %v1010
      %1506 = vmatmul.f32.gmra.mxu0 %v1488
      %v1507 = vpop.f32.mrf.mxu0
      %v1508 = vadd.f32 0.0, %v1507
      %1509 = vdwg.mxu0
      %v1510 = vld [vmem:[%s10] sm:$0xff]
      %v1511 = vld [vmem:[%s10 + $0x8] sm:$0xff]
      %v1512 = vld [vmem:[%s10 + $0x10] sm:$0xff]
      %v1513 = vld [vmem:[%s10 + $0x18] sm:$0xff]
      %v1514 = vld [vmem:[%s10 + $0x20] sm:$0xff]
      %v1515 = vld [vmem:[%s10 + $0x28] sm:$0xff]
      %v1516 = vld [vmem:[%s10 + $0x30] sm:$0xff]
      %v1517 = vld [vmem:[%s10 + $0x38] sm:$0xff]
      %v1518 = vld [vmem:[%s10 + $0x40] sm:$0xff]
      %v1519 = vld [vmem:[%s10 + $0x48] sm:$0xff]
      %v1520 = vld [vmem:[%s10 + $0x50] sm:$0xff]
      %v1521 = vld [vmem:[%s10 + $0x58] sm:$0xff]
      %v1522 = vld [vmem:[%s10 + $0x60] sm:$0xff]
      %v1523 = vld [vmem:[%s10 + $0x68] sm:$0xff]
      %v1524 = vld [vmem:[%s10 + $0x70] sm:$0xff]
      %v1525 = vld [vmem:[%s10 + $0x78] sm:$0xff]
      %v1526 = vld [vmem:[%s10 + $0x80] sm:$0xff]
      %v1527 = vld [vmem:[%s10 + $0x88] sm:$0xff]
      %v1528 = vld [vmem:[%s10 + $0x90] sm:$0xff]
      %v1529 = vld [vmem:[%s10 + $0x98] sm:$0xff]
      %v1530 = vld [vmem:[%s10 + $0xa0] sm:$0xff]
      %v1531 = vld [vmem:[%s10 + $0xa8] sm:$0xff]
      %v1532 = vld [vmem:[%s10 + $0xb0] sm:$0xff]
      %v1533 = vld [vmem:[%s10 + $0xb8] sm:$0xff]
      %v1534 = vld [vmem:[%s10 + $0xc0] sm:$0xff]
      %v1535 = vld [vmem:[%s10 + $0xc8] sm:$0xff]
      %v1536 = vld [vmem:[%s10 + $0xd0] sm:$0xff]
      %v1537 = vld [vmem:[%s10 + $0xd8] sm:$0xff]
      %v1538 = vld [vmem:[%s10 + $0xe0] sm:$0xff]
      %v1539 = vld [vmem:[%s10 + $0xe8] sm:$0xff]
      %v1540 = vld [vmem:[%s10 + $0xf0] sm:$0xff]
      %v1541 = vld [vmem:[%s10 + $0xf8] sm:$0xff]
      %v1542 = vld [vmem:[%s10 + $0x100] sm:$0xff]
      %v1543 = vld [vmem:[%s10 + $0x108] sm:$0xff]
      %v1544 = vld [vmem:[%s10 + $0x110] sm:$0xff]
      %v1545 = vld [vmem:[%s10 + $0x118] sm:$0xff]
      %v1546 = vld [vmem:[%s10 + $0x120] sm:$0xff]
      %v1547 = vld [vmem:[%s10 + $0x128] sm:$0xff]
      %v1548 = vld [vmem:[%s10 + $0x130] sm:$0xff]
      %v1549 = vld [vmem:[%s10 + $0x138] sm:$0xff]
      %v1550 = vld [vmem:[%s10 + $0x140] sm:$0xff]
      %v1551 = vld [vmem:[%s10 + $0x148] sm:$0xff]
      %v1552 = vld [vmem:[%s10 + $0x150] sm:$0xff]
      %v1553 = vld [vmem:[%s10 + $0x158] sm:$0xff]
      %v1554 = vld [vmem:[%s10 + $0x160] sm:$0xff]
      %v1555 = vld [vmem:[%s10 + $0x168] sm:$0xff]
      %v1556 = vld [vmem:[%s10 + $0x170] sm:$0xff]
      %v1557 = vld [vmem:[%s10 + $0x178] sm:$0xff]
      %v1558 = vld [vmem:[%s10 + $0x180] sm:$0xff]
      %v1559 = vld [vmem:[%s10 + $0x188] sm:$0xff]
      %v1560 = vld [vmem:[%s10 + $0x190] sm:$0xff]
      %v1561 = vld [vmem:[%s10 + $0x198] sm:$0xff]
      %v1562 = vld [vmem:[%s10 + $0x1a0] sm:$0xff]
      %v1563 = vld [vmem:[%s10 + $0x1a8] sm:$0xff]
      %v1564 = vld [vmem:[%s10 + $0x1b0] sm:$0xff]
      %v1565 = vld [vmem:[%s10 + $0x1b8] sm:$0xff]
      %v1566 = vld [vmem:[%s10 + $0x1c0] sm:$0xff]
      %v1567 = vld [vmem:[%s10 + $0x1c8] sm:$0xff]
      %v1568 = vld [vmem:[%s10 + $0x1d0] sm:$0xff]
      %v1569 = vld [vmem:[%s10 + $0x1d8] sm:$0xff]
      %v1570 = vld [vmem:[%s10 + $0x1e0] sm:$0xff]
      %v1571 = vld [vmem:[%s10 + $0x1e8] sm:$0xff]
      %v1572 = vld [vmem:[%s10 + $0x1f0] sm:$0xff]
      %v1573 = vld [vmem:[%s10 + $0x1f8] sm:$0xff]
      %v1574 = vld [vmem:[%s10 + $0x200] sm:$0xff]
      %v1575 = vld [vmem:[%s10 + $0x208] sm:$0xff]
      %v1576 = vld [vmem:[%s10 + $0x210] sm:$0xff]
      %v1577 = vld [vmem:[%s10 + $0x218] sm:$0xff]
      %v1578 = vld [vmem:[%s10 + $0x220] sm:$0xff]
      %v1579 = vld [vmem:[%s10 + $0x228] sm:$0xff]
      %v1580 = vld [vmem:[%s10 + $0x230] sm:$0xff]
      %v1581 = vld [vmem:[%s10 + $0x238] sm:$0xff]
      %v1582 = vld [vmem:[%s10 + $0x240] sm:$0xff]
      %v1583 = vld [vmem:[%s10 + $0x248] sm:$0xff]
      %v1584 = vld [vmem:[%s10 + $0x250] sm:$0xff]
      %v1585 = vld [vmem:[%s10 + $0x258] sm:$0xff]
      %v1586 = vld [vmem:[%s10 + $0x260] sm:$0xff]
      %v1587 = vld [vmem:[%s10 + $0x268] sm:$0xff]
      %v1588 = vld [vmem:[%s10 + $0x270] sm:$0xff]
      %v1589 = vld [vmem:[%s10 + $0x278] sm:$0xff]
      %v1590 = vld [vmem:[%s10 + $0x280] sm:$0xff]
      %v1591 = vld [vmem:[%s10 + $0x288] sm:$0xff]
      %v1592 = vld [vmem:[%s10 + $0x290] sm:$0xff]
      %v1593 = vld [vmem:[%s10 + $0x298] sm:$0xff]
      %v1594 = vld [vmem:[%s10 + $0x2a0] sm:$0xff]
      %v1595 = vld [vmem:[%s10 + $0x2a8] sm:$0xff]
      %v1596 = vld [vmem:[%s10 + $0x2b0] sm:$0xff]
      %v1597 = vld [vmem:[%s10 + $0x2b8] sm:$0xff]
      %v1598 = vld [vmem:[%s10 + $0x2c0] sm:$0xff]
      %v1599 = vld [vmem:[%s10 + $0x2c8] sm:$0xff]
      %v1600 = vld [vmem:[%s10 + $0x2d0] sm:$0xff]
      %v1601 = vld [vmem:[%s10 + $0x2d8] sm:$0xff]
      %v1602 = vld [vmem:[%s10 + $0x2e0] sm:$0xff]
      %v1603 = vld [vmem:[%s10 + $0x2e8] sm:$0xff]
      %v1604 = vld [vmem:[%s10 + $0x2f0] sm:$0xff]
      %v1605 = vld [vmem:[%s10 + $0x2f8] sm:$0xff]
      %v1606 = vld [vmem:[%s10 + $0x300] sm:$0xff]
      %v1607 = vld [vmem:[%s10 + $0x308] sm:$0xff]
      %v1608 = vld [vmem:[%s10 + $0x310] sm:$0xff]
      %v1609 = vld [vmem:[%s10 + $0x318] sm:$0xff]
      %v1610 = vld [vmem:[%s10 + $0x320] sm:$0xff]
      %v1611 = vld [vmem:[%s10 + $0x328] sm:$0xff]
      %v1612 = vld [vmem:[%s10 + $0x330] sm:$0xff]
      %v1613 = vld [vmem:[%s10 + $0x338] sm:$0xff]
      %v1614 = vld [vmem:[%s10 + $0x340] sm:$0xff]
      %v1615 = vld [vmem:[%s10 + $0x348] sm:$0xff]
      %v1616 = vld [vmem:[%s10 + $0x350] sm:$0xff]
      %v1617 = vld [vmem:[%s10 + $0x358] sm:$0xff]
      %v1618 = vld [vmem:[%s10 + $0x360] sm:$0xff]
      %v1619 = vld [vmem:[%s10 + $0x368] sm:$0xff]
      %v1620 = vld [vmem:[%s10 + $0x370] sm:$0x3]
      %v1621 = vld [vmem:[%s10 + $0x378] sm:$0x3]
      %v1622 = vld [vmem:[%s10 + $0x380] sm:$0x3]
      %v1623 = vld [vmem:[%s10 + $0x388] sm:$0x3]
      %v1624 = vld [vmem:[%s10 + $0x390] sm:$0x3]
      %vm1625 = vcmask 408576
      %v1627 = vsel %vm1625, %v1301, 0
      %vm1629 = vcmask 1041408
      %v1631 = vsel %vm1629, %v1620, 0
      %v1634 = vsel %vm1629, %v1621, 0
      %v1637 = vsel %vm1629, %v1622, 0
      %v1640 = vsel %vm1629, %v1623, 0
      %v1643 = vsel %vm1629, %v1624, 0
      %1645 = vmatpush.msra.mxu0 %v1585
      %1646 = vmatpush.msra.mxu0 %v1580
      %1647 = vmatpush.msra.mxu0 %v1575
      %1648 = vmatpush.msra.mxu0 %v1570
      %1649 = vmatpush.msra.mxu0 %v1565
      %1650 = vmatpush.msra.mxu0 %v1560
      %1651 = vmatpush.msra.mxu0 %v1555
      %1652 = vmatpush.msra.mxu0 %v1550
      %1653 = vmatpush.msra.mxu0 %v1545
      %1654 = vmatpush.msra.mxu0 %v1540
      %1655 = vmatpush.msra.mxu0 %v1535
      %1656 = vmatpush.msra.mxu0 %v1530
      %1657 = vmatpush.msra.mxu0 %v1525
      %1658 = vmatpush.msra.mxu0 %v1520
      %1659 = vmatpush.msra.mxu0 %v1515
      %1660 = vmatpush.msra.mxu0 %v1510
      %1661 = vmatmul.f32.gmra.mxu0 %v1278
      %v1662 = vpop.f32.mrf.mxu0
      %v1663 = vadd.f32 0.0, %v1662
      %1664 = vdwg.mxu0
      %1665 = vmatpush.msra.mxu0 0.0
      %1666 = vmatpush.msra.mxu0 0.0
      %1667 = vmatpush.msra.mxu0 0.0
      %1668 = vmatpush.msra.mxu0 0.0
      %1669 = vmatpush.msra.mxu0 0.0
      %1670 = vmatpush.msra.mxu0 0.0
      %1671 = vmatpush.msra.mxu0 0.0
      %1672 = vmatpush.msra.mxu0 0.0
      %1673 = vmatpush.msra.mxu0 0.0
      %1674 = vmatpush.msra.mxu0 %v1631
      %1675 = vmatpush.msra.mxu0 %v1615
      %1676 = vmatpush.msra.mxu0 %v1610
      %1677 = vmatpush.msra.mxu0 %v1605
      %1678 = vmatpush.msra.mxu0 %v1600
      %1679 = vmatpush.msra.mxu0 %v1595
      %1680 = vmatpush.msra.mxu0 %v1590
      %1681 = vmatmul.f32.gmra.mxu0 %v1627
      %v1682 = vpop.f32.mrf.mxu0
      %v1683 = vadd.f32 %v1663, %v1682
      %1684 = vdwg.mxu0
      %1685 = vmatpush.msra.mxu0 %v1586
      %1686 = vmatpush.msra.mxu0 %v1581
      %1687 = vmatpush.msra.mxu0 %v1576
      %1688 = vmatpush.msra.mxu0 %v1571
      %1689 = vmatpush.msra.mxu0 %v1566
      %1690 = vmatpush.msra.mxu0 %v1561
      %1691 = vmatpush.msra.mxu0 %v1556
      %1692 = vmatpush.msra.mxu0 %v1551
      %1693 = vmatpush.msra.mxu0 %v1546
      %1694 = vmatpush.msra.mxu0 %v1541
      %1695 = vmatpush.msra.mxu0 %v1536
      %1696 = vmatpush.msra.mxu0 %v1531
      %1697 = vmatpush.msra.mxu0 %v1526
      %1698 = vmatpush.msra.mxu0 %v1521
      %1699 = vmatpush.msra.mxu0 %v1516
      %1700 = vmatpush.msra.mxu0 %v1511
      %1701 = vmatmul.f32.gmra.mxu0 %v1278
      %v1702 = vpop.f32.mrf.mxu0
      %v1703 = vadd.f32 0.0, %v1702
      %1704 = vdwg.mxu0
      %1705 = vmatpush.msra.mxu0 0.0
      %1706 = vmatpush.msra.mxu0 0.0
      %1707 = vmatpush.msra.mxu0 0.0
      %1708 = vmatpush.msra.mxu0 0.0
      %1709 = vmatpush.msra.mxu0 0.0
      %1710 = vmatpush.msra.mxu0 0.0
      %1711 = vmatpush.msra.mxu0 0.0
      %1712 = vmatpush.msra.mxu0 0.0
      %1713 = vmatpush.msra.mxu0 0.0
      %1714 = vmatpush.msra.mxu0 %v1634
      %1715 = vmatpush.msra.mxu0 %v1616
      %1716 = vmatpush.msra.mxu0 %v1611
      %1717 = vmatpush.msra.mxu0 %v1606
      %1718 = vmatpush.msra.mxu0 %v1601
      %1719 = vmatpush.msra.mxu0 %v1596
      %1720 = vmatpush.msra.mxu0 %v1591
      %1721 = vmatmul.f32.gmra.mxu0 %v1627
      %v1722 = vpop.f32.mrf.mxu0
      %v1723 = vadd.f32 %v1703, %v1722
      %1724 = vdwg.mxu0
      %1725 = vmatpush.msra.mxu0 %v1587
      %1726 = vmatpush.msra.mxu0 %v1582
      %1727 = vmatpush.msra.mxu0 %v1577
      %1728 = vmatpush.msra.mxu0 %v1572
      %1729 = vmatpush.msra.mxu0 %v1567
      %1730 = vmatpush.msra.mxu0 %v1562
      %1731 = vmatpush.msra.mxu0 %v1557
      %1732 = vmatpush.msra.mxu0 %v1552
      %1733 = vmatpush.msra.mxu0 %v1547
      %1734 = vmatpush.msra.mxu0 %v1542
      %1735 = vmatpush.msra.mxu0 %v1537
      %1736 = vmatpush.msra.mxu0 %v1532
      %1737 = vmatpush.msra.mxu0 %v1527
      %1738 = vmatpush.msra.mxu0 %v1522
      %1739 = vmatpush.msra.mxu0 %v1517
      %1740 = vmatpush.msra.mxu0 %v1512
      %1741 = vmatmul.f32.gmra.mxu0 %v1278
      %v1742 = vpop.f32.mrf.mxu0
      %v1743 = vadd.f32 0.0, %v1742
      %1744 = vdwg.mxu0
      %1745 = vmatpush.msra.mxu0 0.0
      %1746 = vmatpush.msra.mxu0 0.0
      %1747 = vmatpush.msra.mxu0 0.0
      %1748 = vmatpush.msra.mxu0 0.0
      %1749 = vmatpush.msra.mxu0 0.0
      %1750 = vmatpush.msra.mxu0 0.0
      %1751 = vmatpush.msra.mxu0 0.0
      %1752 = vmatpush.msra.mxu0 0.0
      %1753 = vmatpush.msra.mxu0 0.0
      %1754 = vmatpush.msra.mxu0 %v1637
      %1755 = vmatpush.msra.mxu0 %v1617
      %1756 = vmatpush.msra.mxu0 %v1612
      %1757 = vmatpush.msra.mxu0 %v1607
      %1758 = vmatpush.msra.mxu0 %v1602
      %1759 = vmatpush.msra.mxu0 %v1597
      %1760 = vmatpush.msra.mxu0 %v1592
      %1761 = vmatmul.f32.gmra.mxu0 %v1627
      %v1762 = vpop.f32.mrf.mxu0
      %v1763 = vadd.f32 %v1743, %v1762
      %1764 = vdwg.mxu0
      %1765 = vmatpush.msra.mxu0 %v1588
      %1766 = vmatpush.msra.mxu0 %v1583
      %1767 = vmatpush.msra.mxu0 %v1578
      %1768 = vmatpush.msra.mxu0 %v1573
      %1769 = vmatpush.msra.mxu0 %v1568
      %1770 = vmatpush.msra.mxu0 %v1563
      %1771 = vmatpush.msra.mxu0 %v1558
      %1772 = vmatpush.msra.mxu0 %v1553
      %1773 = vmatpush.msra.mxu0 %v1548
      %1774 = vmatpush.msra.mxu0 %v1543
      %1775 = vmatpush.msra.mxu0 %v1538
      %1776 = vmatpush.msra.mxu0 %v1533
      %1777 = vmatpush.msra.mxu0 %v1528
      %1778 = vmatpush.msra.mxu0 %v1523
      %1779 = vmatpush.msra.mxu0 %v1518
      %1780 = vmatpush.msra.mxu0 %v1513
      %1781 = vmatmul.f32.gmra.mxu0 %v1278
      %v1782 = vpop.f32.mrf.mxu0
      %v1783 = vadd.f32 0.0, %v1782
      %1784 = vdwg.mxu0
      %1785 = vmatpush.msra.mxu0 0.0
      %1786 = vmatpush.msra.mxu0 0.0
      %1787 = vmatpush.msra.mxu0 0.0
      %1788 = vmatpush.msra.mxu0 0.0
      %1789 = vmatpush.msra.mxu0 0.0
      %1790 = vmatpush.msra.mxu0 0.0
      %1791 = vmatpush.msra.mxu0 0.0
      %1792 = vmatpush.msra.mxu0 0.0
      %1793 = vmatpush.msra.mxu0 0.0
      %1794 = vmatpush.msra.mxu0 %v1640
      %1795 = vmatpush.msra.mxu0 %v1618
      %1796 = vmatpush.msra.mxu0 %v1613
      %1797 = vmatpush.msra.mxu0 %v1608
      %1798 = vmatpush.msra.mxu0 %v1603
      %1799 = vmatpush.msra.mxu0 %v1598
      %1800 = vmatpush.msra.mxu0 %v1593
      %1801 = vmatmul.f32.gmra.mxu0 %v1627
      %v1802 = vpop.f32.mrf.mxu0
      %v1803 = vadd.f32 %v1783, %v1802
      %1804 = vdwg.mxu0
      %1805 = vmatpush.msra.mxu0 %v1589
      %1806 = vmatpush.msra.mxu0 %v1584
      %1807 = vmatpush.msra.mxu0 %v1579
      %1808 = vmatpush.msra.mxu0 %v1574
      %1809 = vmatpush.msra.mxu0 %v1569
      %1810 = vmatpush.msra.mxu0 %v1564
      %1811 = vmatpush.msra.mxu0 %v1559
      %1812 = vmatpush.msra.mxu0 %v1554
      %1813 = vmatpush.msra.mxu0 %v1549
      %1814 = vmatpush.msra.mxu0 %v1544
      %1815 = vmatpush.msra.mxu0 %v1539
      %1816 = vmatpush.msra.mxu0 %v1534
      %1817 = vmatpush.msra.mxu0 %v1529
      %1818 = vmatpush.msra.mxu0 %v1524
      %1819 = vmatpush.msra.mxu0 %v1519
      %1820 = vmatpush.msra.mxu0 %v1514
      %1821 = vmatmul.f32.gmra.mxu0 %v1278
      %v1822 = vpop.f32.mrf.mxu0
      %v1823 = vadd.f32 0.0, %v1822
      %1824 = vdwg.mxu0
      %1825 = vmatpush.msra.mxu0 0.0
      %1826 = vmatpush.msra.mxu0 0.0
      %1827 = vmatpush.msra.mxu0 0.0
      %1828 = vmatpush.msra.mxu0 0.0
      %1829 = vmatpush.msra.mxu0 0.0
      %1830 = vmatpush.msra.mxu0 0.0
      %1831 = vmatpush.msra.mxu0 0.0
      %1832 = vmatpush.msra.mxu0 0.0
      %1833 = vmatpush.msra.mxu0 0.0
      %1834 = vmatpush.msra.mxu0 %v1643
      %1835 = vmatpush.msra.mxu0 %v1619
      %1836 = vmatpush.msra.mxu0 %v1614
      %1837 = vmatpush.msra.mxu0 %v1609
      %1838 = vmatpush.msra.mxu0 %v1604
      %1839 = vmatpush.msra.mxu0 %v1599
      %1840 = vmatpush.msra.mxu0 %v1594
      %1841 = vmatmul.f32.gmra.mxu0 %v1627
      %v1842 = vpop.f32.mrf.mxu0
      %v1843 = vadd.f32 %v1823, %v1842
      %1844 = vdwg.mxu0
      %v1845 = vld [vmem:[%s11] sm:$0xff]
      %v1846 = vld [vmem:[%s11 + $0x8] sm:$0xff]
      %v1847 = vld [vmem:[%s11 + $0x10] sm:$0xff]
      %v1848 = vld [vmem:[%s11 + $0x18] sm:$0xff]
      %v1849 = vld [vmem:[%s11 + $0x20] sm:$0xff]
      %v1850 = vld [vmem:[%s11 + $0x28] sm:$0xff]
      %v1851 = vld [vmem:[%s11 + $0x30] sm:$0xff]
      %v1852 = vld [vmem:[%s11 + $0x38] sm:$0xff]
      %v1853 = vld [vmem:[%s11 + $0x40] sm:$0xff]
      %v1854 = vld [vmem:[%s11 + $0x48] sm:$0xff]
      %v1855 = vld [vmem:[%s11 + $0x50] sm:$0xff]
      %v1856 = vld [vmem:[%s11 + $0x58] sm:$0xff]
      %v1857 = vld [vmem:[%s11 + $0x60] sm:$0xff]
      %v1858 = vld [vmem:[%s11 + $0x68] sm:$0xff]
      %v1859 = vld [vmem:[%s11 + $0x70] sm:$0x3]
      %v1860 = vld [vmem:[%s11 + $0x78] sm:$0x3]
      %vm1861 = vcmask 474112
      %v1863 = vsel %vm1861, %v1357, 0
      %v1866 = vsel %vm1629, %v1859, 0
      %v1869 = vsel %vm1629, %v1860, 0
      %1871 = vmatpush.msra.mxu0 0.0
      %1872 = vmatpush.msra.mxu0 0.0
      %1873 = vmatpush.msra.mxu0 0.0
      %1874 = vmatpush.msra.mxu0 0.0
      %1875 = vmatpush.msra.mxu0 0.0
      %1876 = vmatpush.msra.mxu0 0.0
      %1877 = vmatpush.msra.mxu0 0.0
      %1878 = vmatpush.msra.mxu0 0.0
      %1879 = vmatpush.msra.mxu0 %v1866
      %1880 = vmatpush.msra.mxu0 %v1857
      %1881 = vmatpush.msra.mxu0 %v1855
      %1882 = vmatpush.msra.mxu0 %v1853
      %1883 = vmatpush.msra.mxu0 %v1851
      %1884 = vmatpush.msra.mxu0 %v1849
      %1885 = vmatpush.msra.mxu0 %v1847
      %1886 = vmatpush.msra.mxu0 %v1845
      %1887 = vmatmul.f32.gmra.mxu0 %v1863
      %v1888 = vpop.f32.mrf.mxu0
      %v1889 = vadd.f32 0.0, %v1888
      %1890 = vdwg.mxu0
      %1891 = vmatpush.msra.mxu0 0.0
      %1892 = vmatpush.msra.mxu0 0.0
      %1893 = vmatpush.msra.mxu0 0.0
      %1894 = vmatpush.msra.mxu0 0.0
      %1895 = vmatpush.msra.mxu0 0.0
      %1896 = vmatpush.msra.mxu0 0.0
      %1897 = vmatpush.msra.mxu0 0.0
      %1898 = vmatpush.msra.mxu0 0.0
      %1899 = vmatpush.msra.mxu0 %v1869
      %1900 = vmatpush.msra.mxu0 %v1858
      %1901 = vmatpush.msra.mxu0 %v1856
      %1902 = vmatpush.msra.mxu0 %v1854
      %1903 = vmatpush.msra.mxu0 %v1852
      %1904 = vmatpush.msra.mxu0 %v1850
      %1905 = vmatpush.msra.mxu0 %v1848
      %1906 = vmatpush.msra.mxu0 %v1846
      %1907 = vmatmul.f32.gmra.mxu0 %v1863
      %v1908 = vpop.f32.mrf.mxu0
      %v1909 = vadd.f32 0.0, %v1908
      %1910 = vdwg.mxu0
      %v1912 = vsel %vm968, %v1012, 0
      %1914 = vmatpush.msra.mxu0 0.0
      %1915 = vmatpush.msra.mxu0 0.0
      %1916 = vmatpush.msra.mxu0 0.0
      %1917 = vmatpush.msra.mxu0 0.0
      %1918 = vmatpush.msra.mxu0 0.0
      %1919 = vmatpush.msra.mxu0 0.0
      %1920 = vmatpush.msra.mxu0 0.0
      %1921 = vmatpush.msra.mxu0 %v1177
      %1922 = vmatpush.msra.mxu0 %v1154
      %1923 = vmatpush.msra.mxu0 %v1131
      %1924 = vmatpush.msra.mxu0 %v1109
      %1925 = vmatpush.msra.mxu0 %v1089
      %1926 = vmatpush.msra.mxu0 %v1069
      %1927 = vmatpush.msra.mxu0 %v1049
      %1928 = vmatpush.msra.mxu0 %v1029
      %1929 = vmatpush.msra.mxu0 %v528
      %1930 = vmatmul.f32.gmra.mxu0 %v1912
      %v1931 = vpop.f32.mrf.mxu0
      %v1932 = vadd.f32 %v1683, %v1931
      %1933 = vdwg.mxu0
      %1934 = vmatpush.msra.mxu0 0.0
      %1935 = vmatpush.msra.mxu0 0.0
      %1936 = vmatpush.msra.mxu0 0.0
      %1937 = vmatpush.msra.mxu0 0.0
      %1938 = vmatpush.msra.mxu0 0.0
      %1939 = vmatpush.msra.mxu0 0.0
      %1940 = vmatpush.msra.mxu0 0.0
      %1941 = vmatpush.msra.mxu0 %v1178
      %1942 = vmatpush.msra.mxu0 %v1155
      %1943 = vmatpush.msra.mxu0 %v1132
      %1944 = vmatpush.msra.mxu0 %v1110
      %1945 = vmatpush.msra.mxu0 %v1090
      %1946 = vmatpush.msra.mxu0 %v1070
      %1947 = vmatpush.msra.mxu0 %v1050
      %1948 = vmatpush.msra.mxu0 %v1030
      %1949 = vmatpush.msra.mxu0 %v529
      %1950 = vmatmul.f32.gmra.mxu0 %v1912
      %v1951 = vpop.f32.mrf.mxu0
      %v1952 = vadd.f32 %v1723, %v1951
      %1953 = vdwg.mxu0
      %1954 = vmatpush.msra.mxu0 0.0
      %1955 = vmatpush.msra.mxu0 0.0
      %1956 = vmatpush.msra.mxu0 0.0
      %1957 = vmatpush.msra.mxu0 0.0
      %1958 = vmatpush.msra.mxu0 0.0
      %1959 = vmatpush.msra.mxu0 0.0
      %1960 = vmatpush.msra.mxu0 0.0
      %1961 = vmatpush.msra.mxu0 %v1179
      %1962 = vmatpush.msra.mxu0 %v1156
      %1963 = vmatpush.msra.mxu0 %v1133
      %1964 = vmatpush.msra.mxu0 %v1111
      %1965 = vmatpush.msra.mxu0 %v1091
      %1966 = vmatpush.msra.mxu0 %v1071
      %1967 = vmatpush.msra.mxu0 %v1051
      %1968 = vmatpush.msra.mxu0 %v1031
      %1969 = vmatpush.msra.mxu0 %v530
      %1970 = vmatmul.f32.gmra.mxu0 %v1912
      %v1971 = vpop.f32.mrf.mxu0
      %v1972 = vadd.f32 %v1763, %v1971
      %1973 = vdwg.mxu0
      %1974 = vmatpush.msra.mxu0 0.0
      %1975 = vmatpush.msra.mxu0 0.0
      %1976 = vmatpush.msra.mxu0 0.0
      %1977 = vmatpush.msra.mxu0 0.0
      %1978 = vmatpush.msra.mxu0 0.0
      %1979 = vmatpush.msra.mxu0 0.0
      %1980 = vmatpush.msra.mxu0 0.0
      %1981 = vmatpush.msra.mxu0 %v1180
      %1982 = vmatpush.msra.mxu0 %v1157
      %1983 = vmatpush.msra.mxu0 %v1134
      %1984 = vmatpush.msra.mxu0 %v1112
      %1985 = vmatpush.msra.mxu0 %v1092
      %1986 = vmatpush.msra.mxu0 %v1072
      %1987 = vmatpush.msra.mxu0 %v1052
      %1988 = vmatpush.msra.mxu0 %v1032
      %1989 = vmatpush.msra.mxu0 %v531
      %1990 = vmatmul.f32.gmra.mxu0 %v1912
      %v1991 = vpop.f32.mrf.mxu0
      %v1992 = vadd.f32 %v1803, %v1991
      %1993 = vdwg.mxu0
      %1994 = vmatpush.msra.mxu0 0.0
      %1995 = vmatpush.msra.mxu0 0.0
      %1996 = vmatpush.msra.mxu0 0.0
      %1997 = vmatpush.msra.mxu0 0.0
      %1998 = vmatpush.msra.mxu0 0.0
      %1999 = vmatpush.msra.mxu0 0.0
      %2000 = vmatpush.msra.mxu0 0.0
      %2001 = vmatpush.msra.mxu0 %v1181
      %2002 = vmatpush.msra.mxu0 %v1158
      %2003 = vmatpush.msra.mxu0 %v1135
      %2004 = vmatpush.msra.mxu0 %v1107
      %2005 = vmatpush.msra.mxu0 %v1087
      %2006 = vmatpush.msra.mxu0 %v1067
      %2007 = vmatpush.msra.mxu0 %v1047
      %2008 = vmatpush.msra.mxu0 %v1027
      %2009 = vmatpush.msra.mxu0 %v532
      %2010 = vmatmul.f32.gmra.mxu0 %v1912
      %v2011 = vpop.f32.mrf.mxu0
      %v2012 = vadd.f32 %v1843, %v2011
      %2013 = vdwg.mxu0
      %v2014 = vmax.f32 %v1932, 0.0
      %v2015 = vmax.f32 %v1952, 0.0
      %v2016 = vmax.f32 %v1972, 0.0
      %v2017 = vmax.f32 %v1992, 0.0
      %v2018 = vmax.f32 %v2012, 0.0
      %2019 = vst [vmem:[%s518] sm:$0xff] %v2014
      %2020 = vst [vmem:[%s518 + $0x8] sm:$0xff] %v2015
      %2021 = vst [vmem:[%s518 + $0x10] sm:$0xff] %v2016
      %2022 = vst [vmem:[%s518 + $0x18] sm:$0xff] %v2017
      %vm2023 = vcmask 801792
      %2024 = vst.msk [vmem:[%s518 + $0x20] sm:$0xff] %vm2023, %v2018
      %v2025 = vadd.f32 %v1275, %v1439
      %v2026 = vadd.f32 %v1298, %v1459
      %v2027 = vadd.f32 %v2025, %v1889
      %v2028 = vadd.f32 %v2026, %v1909
      %v2029 = vmax.f32 %v2027, 0.0
      %v2030 = vmax.f32 %v2028, 0.0
      %2031 = vst [vmem:[%s523] sm:$0xff] %v2029
      %2032 = vst.msk [vmem:[%s523 + $0x8] sm:$0xff] %vm1625, %v2030
      %v2033 = vadd.f32 %v1354, %v1508
      %v2034 = vmax.f32 %v2033, 0.0
      %2035 = vst.msk [vmem:[%s527] sm:$0xff] %vm1861, %v2034
      %p2036 = scmp.lt.s32.totalorder %s26, 1
      %s2037 = scalar_select %p2036, %s26, 1
      %s2038 = smul.addr %s2037, 5
      %s2039 = smul.addr %s2038, 8
      %s2040 = scalar_lea.vmem %s12, %s2039
      %p2041 = scmp.lt.s32.totalorder %s26, 1
      %s2042 = scalar_select %p2041, %s26, 1
      %s2043 = smul.addr %s2042, 2
      %s2044 = smul.addr %s2043, 8
      %s2045 = scalar_lea.vmem %s13, %s2044
      %p2046 = scmp.lt.s32.totalorder %s26, 1
      %s2047 = scalar_select %p2046, %s26, 1
      %s2048 = smul.addr %s2047, 8
      %s2049 = scalar_lea.vmem %s14, %s2048
      // Predicated region
      $region69: #{octave_cr_forward.1} parent=67 // pred_check
        %p2050 = pneg %p311
      $region70: #{octave_cr_forward.1} parent=67 // pred_check_branch
        %2052 = sbr.rel (%p2050) target = $region72
      $region71: #{octave_cr_forward.1} parent=67 // pred_region
        _
      $region72: #{octave_cr_forward.1} parent=67 // pred_fallthru
        _
      // Predicated region
      $region73: #{octave_cr_forward.1} parent=67 // pred_check
        %p2053 = pneg %p337
      $region74: #{octave_cr_forward.1} parent=67 // pred_check_branch
        %2055 = sbr.rel (%p2053) target = $region76
      $region75: #{octave_cr_forward.1} parent=67 // pred_region
        _
      $region76: #{octave_cr_forward.1} parent=67 // pred_fallthru
        _
      // Predicated region
      $region77: #{octave_cr_forward.1} parent=67 // pred_check
        %p2056 = pneg %p363
      $region78: #{octave_cr_forward.1} parent=67 // pred_check_branch
        %2058 = sbr.rel (%p2056) target = $region80
      $region79: #{octave_cr_forward.1} parent=67 // pred_region
        _
      $region80: #{octave_cr_forward.1} parent=67 // pred_fallthru
        _
    $region68: #{octave_cr_forward.1} parent=5 // pred_fallthru
      _
    %p2059 = scmp.le.s32.totalorder 2, %s21
    // Predicated region
    $region81: #{octave_cr_forward.1} parent=5 // pred_check
      %p2060 = pneg %p2059
    $region82: #{octave_cr_forward.1} parent=5 // pred_check_branch
      %2062 = sbr.rel (%p2060) target = $region84
    $region83: #{octave_cr_forward.1} parent=5 // pred_region
      %s2063 = ssub.s32 %s21, 2
      // Predicated region
      $region85: #{octave_cr_forward.1} parent=83 // pred_check
        %p2064 = pneg %p317
      $region86: #{octave_cr_forward.1} parent=83 // pred_check_branch
        %2066 = sbr.rel (%p2064) target = $region88
      $region87: #{octave_cr_forward.1} parent=83 // pred_region
        %p2067 = scmp.lt.s32.totalorder %s27, 1
        %s2068 = scalar_select %p2067, %s27, 1
        %s2069 = smul.addr %s2068, 5
        %s2070 = smul.addr %s2069, 8
        %s2071 = scalar_lea.vmem %s12, %s2070
      $region88: #{octave_cr_forward.1} parent=83 // pred_fallthru
        _
      // Predicated region
      $region89: #{octave_cr_forward.1} parent=83 // pred_check
        %p2072 = pneg %p343
      $region90: #{octave_cr_forward.1} parent=83 // pred_check_branch
        %2074 = sbr.rel (%p2072) target = $region92
      $region91: #{octave_cr_forward.1} parent=83 // pred_region
        %p2075 = scmp.lt.s32.totalorder %s27, 1
        %s2076 = scalar_select %p2075, %s27, 1
        %s2077 = smul.addr %s2076, 2
        %s2078 = smul.addr %s2077, 8
        %s2079 = scalar_lea.vmem %s13, %s2078
      $region92: #{octave_cr_forward.1} parent=83 // pred_fallthru
        _
      // Predicated region
      $region93: #{octave_cr_forward.1} parent=83 // pred_check
        %p2080 = pneg %p369
      $region94: #{octave_cr_forward.1} parent=83 // pred_check_branch
        %2082 = sbr.rel (%p2080) target = $region96
      $region95: #{octave_cr_forward.1} parent=83 // pred_region
        %p2083 = scmp.lt.s32.totalorder %s27, 1
        %s2084 = scalar_select %p2083, %s27, 1
        %s2085 = smul.addr %s2084, 8
        %s2086 = scalar_lea.vmem %s14, %s2085
      $region96: #{octave_cr_forward.1} parent=83 // pred_fallthru
        _
    $region84: #{octave_cr_forward.1} parent=5 // pred_fallthru
      _
  $region6: #{octave_cr_forward.1} parent=0 // loop_footer
    %s25 = sadd.s32 1, %s21
  $region7: #{octave_cr_forward.1} parent=0 // loop_footer_branch
    %20 = sbr.rel target = $region3
  $region8: #{octave_cr_forward.1} parent=0 // loop_exit
    _

</llo_original>
